<compile_context>
chip_gen: v7x
topology: tpu7x:2x2x1
jax: 0.10.0
libtpu: 0.0.40
codegen_flags: <defaults>
</compile_context>

<pallas_src>
import functools

import jax
import jax.numpy as jnp
from jax.experimental import pallas as pl
from jax.experimental.pallas import tpu as pltpu

LN_EPS = 1e-5          # PyTorch nn.LayerNorm default
LEAKY_SLOPE = 0.2


def _round_up(v, m):
    return ((v + m - 1) // m) * m


def _layernorm(h, gamma, beta):
    mu = jnp.mean(h, axis=-1, keepdims=True)
    var = jnp.mean((h - mu) ** 2, axis=-1, keepdims=True)   # biased, like torch
    return (h - mu) * jax.lax.rsqrt(var + LN_EPS) * gamma + beta


def _leaky_relu(h):
    return jnp.where(h > 0, h, LEAKY_SLOPE * h)


# ------------------------------- kernel --------------------------------------
def h_theta_kernel(compute_dtype,
                   x_ref,
                   w_in_ref, b_in_ref, g_in_ref, be_in_ref,
                   wf_ref, bf_ref,
                   w1_ref, b1_ref, g1_ref, be1_ref,
                   w2_ref, b2_ref, g2_ref, be2_ref,
                   sew1_ref, seb1_ref, sew2_ref, seb2_ref,
                   scale_ref,
                   o_ref,
                   h_ref):
    i = pl.program_id(1)                      # residual-block index (arbitrary axis)
    Bt, N, Din = x_ref.shape
    M, H = h_ref.shape                        # M = Bt * N
    Dout_pad = o_ref.shape[-1]

    # ---- input layer: Linear -> LayerNorm -> LeakyReLU -> Dropout(id) ----
    @pl.when(i == 0)
    def _():
        xm = x_ref[...].reshape(M, Din).astype(compute_dtype)
        h = jnp.dot(xm, w_in_ref[...],
                    preferred_element_type=jnp.float32) + b_in_ref[...]
        h = _layernorm(h, g_in_ref[...], be_in_ref[...])
        h_ref[...] = _leaky_relu(h)

    # ---- residual block i (weights for block i streamed into VMEM) ----
    residual = h_ref[...]                                             # (M, H) f32

    y = jnp.dot(residual.astype(compute_dtype), w1_ref[0],
                preferred_element_type=jnp.float32) + b1_ref[0]
    y = _layernorm(y, g1_ref[0], be1_ref[0])
    y = _leaky_relu(y)
    # dropout: identity (eval)
    y = jnp.dot(y.astype(compute_dtype), w2_ref[0],
                preferred_element_type=jnp.float32) + b2_ref[0]
    y = _layernorm(y, g2_ref[0], be2_ref[0])

    # SEBlock1D: squeeze over the N axis, per batch element
    y3 = y.reshape(Bt, N, H)
    s = jnp.mean(y3, axis=1)                                          # (Bt, H)
    z = jnp.dot(s.astype(compute_dtype), sew1_ref[0],
                preferred_element_type=jnp.float32) + seb1_ref[0]
    z = jnp.maximum(z, 0.0)                                           # (Bt, R)
    gate = jax.nn.sigmoid(
        jnp.dot(z.astype(compute_dtype), sew2_ref[0],
                preferred_element_type=jnp.float32) + seb2_ref[0])    # (Bt, H)
    y = (y3 * gate.reshape(Bt, 1, H)).reshape(M, H)

    h_ref[...] = _leaky_relu(y * scale_ref[0] + residual)

    # ---- final dropout (identity) + output linear (lane-dense padded) ----
    @pl.when(i == pl.num_programs(1) - 1)
    def _():
        out = jnp.dot(h_ref[...].astype(compute_dtype), wf_ref[...],
                      preferred_element_type=jnp.float32) + bf_ref[...]
        o_ref[...] = out.reshape(Bt, N, Dout_pad)


# ------------------------------- wrapper --------------------------------------
def _const_spec(shape):
    nd = len(shape)
    return pl.BlockSpec(shape, lambda b, i, _nd=nd: (0,) * _nd)


def _per_block_spec(shape):
    nd = len(shape)
    return pl.BlockSpec((1,) + tuple(shape[1:]),
                        lambda b, i, _nd=nd: (i,) + (0,) * (_nd - 1))


def h_theta_forward(x, params, num_blocks, *,
                    compute_dtype=jnp.bfloat16, batch_tile=8):
    B, N, Din = x.shape
    H = params["w_in"].shape[1]
    Dout = params["wf"].shape[1]
    Dout_pad = _round_up(Dout, 128)           # lane-dense output stores

    # Zero-pad output projection to the lane-dense width.
    wf = jnp.zeros((H, Dout_pad), jnp.float32).at[:, :Dout].set(params["wf"])
    bf = jnp.zeros((1, Dout_pad), jnp.float32).at[:, :Dout].set(params["bf"])

    # Batch tiling: Bt elements per grid step (pad B if needed).
    Bt = max(1, min(batch_tile, B))
    B_pad = _round_up(B, Bt)
    if B_pad != B:
        x = jnp.pad(x, ((0, B_pad - B), (0, 0), (0, 0)))

    # Matmul weights in compute dtype (halves DMA / VMEM in bf16 mode);
    # biases / LayerNorm params / residual scales stay f32.
    cd = compute_dtype
    shared = [params["w_in"].astype(cd), params["b_in"], params["g_in"],
              params["be_in"], wf.astype(cd), bf]
    per_block = [params["w1"].astype(cd), params["b1"], params["g1"], params["be1"],
                 params["w2"].astype(cd), params["b2"], params["g2"], params["be2"],
                 params["sew1"].astype(cd), params["seb1"],
                 params["sew2"].astype(cd), params["seb2"],
                 params["scale"]]

    in_specs = [pl.BlockSpec((Bt, N, Din), lambda b, i: (b, 0, 0))]
    in_specs += [_const_spec(w.shape) for w in shared]
    in_specs += [_per_block_spec(w.shape) for w in per_block]

    kernel = functools.partial(h_theta_kernel, cd)
    out = pl.pallas_call(
        kernel,
        out_shape=jax.ShapeDtypeStruct((B_pad, N, Dout_pad), jnp.float32),
        grid_spec=pltpu.PrefetchScalarGridSpec(
            num_scalar_prefetch=0,
            grid=(B_pad // Bt, num_blocks),
            in_specs=in_specs,
            out_specs=pl.BlockSpec((Bt, N, Dout_pad), lambda b, i: (b, 0, 0)),
            scratch_shapes=[pltpu.VMEM((Bt * N, H), jnp.float32)],
        ),
        compiler_params=pltpu.CompilerParams(
            dimension_semantics=("parallel", "arbitrary")),
    )(x, *shared, *per_block)

    return out[:B, :, :Dout]


# ----------------------------- pure-JAX reference -----------------------------
def h_theta_reference(x, p, num_blocks):
    h = x @ p["w_in"] + p["b_in"]
    h = _layernorm(h, p["g_in"], p["be_in"])
    h = _leaky_relu(h)
    for i in range(num_blocks):
        res = h
        y = h @ p["w1"][i] + p["b1"][i]
        y = _layernorm(y, p["g1"][i], p["be1"][i])
        y = _leaky_relu(y)
        y = y @ p["w2"][i] + p["b2"][i]
        y = _layernorm(y, p["g2"][i], p["be2"][i])
        s = jnp.mean(y, axis=1)                                  # (B, H)
        z = jnp.maximum(s @ p["sew1"][i] + p["seb1"][i], 0.0)    # (B, R)
        gate = jax.nn.sigmoid(z @ p["sew2"][i] + p["seb2"][i])   # (B, H)
        y = y * gate[:, None, :]
        h = _leaky_relu(y * p["scale"][i] + res)
    return h @ p["wf"] + p["bf"]


def make_params(key, input_dim, hidden_dim, output_dim, num_blocks, reduction_ratio):
    reduced = int(hidden_dim * reduction_ratio)
    ks = jax.random.split(key, 8)
    scale = 0.05
    p = {
        "w_in": scale * jax.random.normal(ks[0], (input_dim, hidden_dim), jnp.float32),
        "b_in": scale * jax.random.normal(ks[1], (1, hidden_dim), jnp.float32),
        "g_in": jnp.ones((1, hidden_dim), jnp.float32),
        "be_in": jnp.zeros((1, hidden_dim), jnp.float32),
        "w1": scale * jax.random.normal(ks[2], (num_blocks, hidden_dim, hidden_dim), jnp.float32),
        "b1": jnp.zeros((num_blocks, 1, hidden_dim), jnp.float32),
        "g1": jnp.ones((num_blocks, 1, hidden_dim), jnp.float32),
        "be1": jnp.zeros((num_blocks, 1, hidden_dim), jnp.float32),
        "w2": scale * jax.random.normal(ks[3], (num_blocks, hidden_dim, hidden_dim), jnp.float32),
        "b2": jnp.zeros((num_blocks, 1, hidden_dim), jnp.float32),
        "g2": jnp.ones((num_blocks, 1, hidden_dim), jnp.float32),
        "be2": jnp.zeros((num_blocks, 1, hidden_dim), jnp.float32),
        "sew1": scale * jax.random.normal(ks[4], (num_blocks, hidden_dim, reduced), jnp.float32),
        "seb1": jnp.zeros((num_blocks, 1, reduced), jnp.float32),
        "sew2": scale * jax.random.normal(ks[5], (num_blocks, reduced, hidden_dim), jnp.float32),
        "seb2": jnp.zeros((num_blocks, 1, hidden_dim), jnp.float32),
        "scale": 0.5 * jnp.ones((num_blocks, 1, 1), jnp.float32),
        "wf": scale * jax.random.normal(ks[6], (hidden_dim, output_dim), jnp.float32),
        "bf": scale * jax.random.normal(ks[7], (1, output_dim), jnp.float32),
    }
    return p


if __name__ == "__main__":
    # Small but representative shapes.
    B, N = 2, 8
    input_dim, hidden_dim, output_dim = 4, 32, 3
    num_blocks = 2
    reduction_ratio = 0.25

    key = jax.random.PRNGKey(0)
    kx, kp = jax.random.split(key)
    x = jax.random.normal(kx, (B, N, input_dim), jnp.float32)
    params = make_params(kp, input_dim, hidden_dim, output_dim, num_blocks, reduction_ratio)

    ref = h_theta_reference(x, params, num_blocks)

    # f32 matmul path: bit-faithful check against the reference.
    out_f32 = jax.block_until_ready(
        h_theta_forward(x, params, num_blocks, compute_dtype=jnp.float32))
    assert out_f32.shape == (B, N, output_dim)
    assert jnp.allclose(out_f32, ref, atol=1e-4, rtol=1e-4), (
        f"f32 max abs err = {jnp.max(jnp.abs(out_f32 - ref))}")

    # bf16 matmul path (MXU-peak configuration): relaxed tolerance.
    out_bf16 = jax.block_until_ready(
        h_theta_forward(x, params, num_blocks, compute_dtype=jnp.bfloat16))
    assert out_bf16.shape == (B, N, output_dim)
    assert jnp.allclose(out_bf16, ref, atol=5e-2, rtol=5e-2), (
        f"bf16 max abs err = {jnp.max(jnp.abs(out_bf16 - ref))}")

    print("KERNEL_OK")
</pallas_src>

<mosaic_0001>
module attributes {stable_mosaic.version = 11 : i64} {
  func.func @h_theta_kernel(%arg0: i32, %arg1: i32, %arg2: memref<2x8x4xf32, #tpu.memory_space<vmem>>, %arg3: memref<4x32xf32, #tpu.memory_space<vmem>>, %arg4: memref<1x32xf32, #tpu.memory_space<vmem>>, %arg5: memref<1x32xf32, #tpu.memory_space<vmem>>, %arg6: memref<1x32xf32, #tpu.memory_space<vmem>>, %arg7: memref<32x128xf32, #tpu.memory_space<vmem>>, %arg8: memref<1x128xf32, #tpu.memory_space<vmem>>, %arg9: memref<1x32x32xf32, #tpu.memory_space<vmem>>, %arg10: memref<1x1x32xf32, #tpu.memory_space<vmem>>, %arg11: memref<1x1x32xf32, #tpu.memory_space<vmem>>, %arg12: memref<1x1x32xf32, #tpu.memory_space<vmem>>, %arg13: memref<1x32x32xf32, #tpu.memory_space<vmem>>, %arg14: memref<1x1x32xf32, #tpu.memory_space<vmem>>, %arg15: memref<1x1x32xf32, #tpu.memory_space<vmem>>, %arg16: memref<1x1x32xf32, #tpu.memory_space<vmem>>, %arg17: memref<1x32x8xf32, #tpu.memory_space<vmem>>, %arg18: memref<1x1x8xf32, #tpu.memory_space<vmem>>, %arg19: memref<1x8x32xf32, #tpu.memory_space<vmem>>, %arg20: memref<1x1x32xf32, #tpu.memory_space<vmem>>, %arg21: memref<1x1x1xf32, #tpu.memory_space<vmem>>, %arg22: memref<2x8x128xf32, #tpu.memory_space<vmem>>, %arg23: memref<16x32xf32, #tpu.memory_space<vmem>>) attributes {dimension_semantics = [#tpu.dimension_semantics<parallel>, #tpu.dimension_semantics<arbitrary>], iteration_bounds = array<i64: 1, 2>, scalar_prefetch = 0 : i64, scratch_operands = 1 : i64, tpu.core_type = #tpu.core_type<tc>, window_params = [{transform_indices = @transform_0, window_bounds = array<i64: 2, 8, 4>}, {pipeline_mode = #tpu.pipeline_mode<synchronous>, transform_indices = @transform_1, window_bounds = array<i64: 4, 32>}, {pipeline_mode = #tpu.pipeline_mode<synchronous>, transform_indices = @transform_2, window_bounds = array<i64: 1, 32>}, {pipeline_mode = #tpu.pipeline_mode<synchronous>, transform_indices = @transform_3, window_bounds = array<i64: 1, 32>}, {pipeline_mode = #tpu.pipeline_mode<synchronous>, transform_indices = @transform_4, window_bounds = array<i64: 1, 32>}, {pipeline_mode = #tpu.pipeline_mode<synchronous>, transform_indices = @transform_5, window_bounds = array<i64: 32, 128>}, {pipeline_mode = #tpu.pipeline_mode<synchronous>, transform_indices = @transform_6, window_bounds = array<i64: 1, 128>}, {transform_indices = @transform_7, window_bounds = array<i64: 1, 32, 32>}, {transform_indices = @transform_8, window_bounds = array<i64: 1, 1, 32>}, {transform_indices = @transform_9, window_bounds = array<i64: 1, 1, 32>}, {transform_indices = @transform_10, window_bounds = array<i64: 1, 1, 32>}, {transform_indices = @transform_11, window_bounds = array<i64: 1, 32, 32>}, {transform_indices = @transform_12, window_bounds = array<i64: 1, 1, 32>}, {transform_indices = @transform_13, window_bounds = array<i64: 1, 1, 32>}, {transform_indices = @transform_14, window_bounds = array<i64: 1, 1, 32>}, {transform_indices = @transform_15, window_bounds = array<i64: 1, 32, 8>}, {transform_indices = @transform_16, window_bounds = array<i64: 1, 1, 8>}, {transform_indices = @transform_17, window_bounds = array<i64: 1, 8, 32>}, {transform_indices = @transform_18, window_bounds = array<i64: 1, 1, 32>}, {transform_indices = @transform_19, window_bounds = array<i64: 1, 1, 1>}, {transform_indices = @transform_20, window_bounds = array<i64: 2, 8, 128>}]} {
    %c0_i32 = arith.constant 0 : i32
    %0 = arith.cmpi eq, %arg1, %c0_i32 : i32
    %1 = arith.extui %0 : i1 to i32
    %c0_i32_0 = arith.constant 0 : i32
    %2 = arith.cmpi ne, %1, %c0_i32_0 : i32
    scf.if %2 {
      %c0_65 = arith.constant 0 : index
      %c0_66 = arith.constant 0 : index
      %c0_67 = arith.constant 0 : index
      %118 = vector.load %arg2[%c0_65, %c0_66, %c0_67] : memref<2x8x4xf32, #tpu.memory_space<vmem>>, vector<2x8x4xf32>
      %119 = vector.shape_cast %118 : vector<2x8x4xf32> to vector<16x4xf32>
      %c0_68 = arith.constant 0 : index
      %c0_69 = arith.constant 0 : index
      %120 = vector.load %arg3[%c0_68, %c0_69] : memref<4x32xf32, #tpu.memory_space<vmem>>, vector<4x32xf32>
      %cst_70 = arith.constant dense<0.000000e+00> : vector<16x32xf32>
      %121 = tpu.matmul %119, %120, %cst_70 {dimension_numbers = #tpu.dot_dimension_numbers<[1], [0], [0], [1], [0, 0, 1, 1], [], []>} : vector<16x4xf32>, vector<4x32xf32>, vector<16x32xf32> -> vector<16x32xf32>
      %c0_71 = arith.constant 0 : index
      %c0_72 = arith.constant 0 : index
      %122 = vector.load %arg4[%c0_71, %c0_72] : memref<1x32xf32, #tpu.memory_space<vmem>>, vector<1x32xf32>
      %123 = vector.broadcast %122 : vector<1x32xf32> to vector<16x32xf32>
      %124 = arith.addf %121, %123 : vector<16x32xf32>
      %c0_73 = arith.constant 0 : index
      %c0_74 = arith.constant 0 : index
      %125 = vector.load %arg5[%c0_73, %c0_74] : memref<1x32xf32, #tpu.memory_space<vmem>>, vector<1x32xf32>
      %c0_75 = arith.constant 0 : index
      %c0_76 = arith.constant 0 : index
      %126 = vector.load %arg6[%c0_75, %c0_76] : memref<1x32xf32, #tpu.memory_space<vmem>>, vector<1x32xf32>
      %cst_77 = arith.constant dense<0.000000e+00> : vector<16xf32>
      %127 = vector.multi_reduction <add>, %124, %cst_77 [1] : vector<16x32xf32> to vector<16xf32>
      %128 = vector.shape_cast %127 : vector<16xf32> to vector<16x1xf32>
      %cst_78 = arith.constant 3.200000e+01 : f32
      %129 = vector.broadcast %cst_78 : f32 to vector<16x1xf32>
      %130 = arith.divf %128, %129 : vector<16x1xf32>
      %131 = vector.broadcast %130 : vector<16x1xf32> to vector<16x32xf32>
      %132 = arith.subf %124, %131 : vector<16x32xf32>
      %133 = arith.mulf %132, %132 : vector<16x32xf32>
      %cst_79 = arith.constant dense<0.000000e+00> : vector<16xf32>
      %134 = vector.multi_reduction <add>, %133, %cst_79 [1] : vector<16x32xf32> to vector<16xf32>
      %135 = vector.shape_cast %134 : vector<16xf32> to vector<16x1xf32>
      %cst_80 = arith.constant 3.200000e+01 : f32
      %136 = vector.broadcast %cst_80 : f32 to vector<16x1xf32>
      %137 = arith.divf %135, %136 : vector<16x1xf32>
      %138 = vector.broadcast %130 : vector<16x1xf32> to vector<16x32xf32>
      %139 = arith.subf %124, %138 : vector<16x32xf32>
      %cst_81 = arith.constant 9.99999974E-6 : f32
      %140 = vector.broadcast %cst_81 : f32 to vector<16x1xf32>
      %141 = arith.addf %137, %140 : vector<16x1xf32>
      %142 = math.rsqrt %141 : vector<16x1xf32>
      %143 = vector.broadcast %142 : vector<16x1xf32> to vector<16x32xf32>
      %144 = arith.mulf %139, %143 : vector<16x32xf32>
      %145 = vector.broadcast %125 : vector<1x32xf32> to vector<16x32xf32>
      %146 = arith.mulf %144, %145 : vector<16x32xf32>
      %147 = vector.broadcast %126 : vector<1x32xf32> to vector<16x32xf32>
      %148 = arith.addf %146, %147 : vector<16x32xf32>
      %cst_82 = arith.constant 0.000000e+00 : f32
      %149 = vector.broadcast %cst_82 : f32 to vector<16x32xf32>
      %150 = arith.cmpf ogt, %148, %149 : vector<16x32xf32>
      %cst_83 = arith.constant 2.000000e-01 : f32
      %151 = vector.broadcast %cst_83 : f32 to vector<16x32xf32>
      %152 = arith.mulf %151, %148 : vector<16x32xf32>
      %153 = arith.select %150, %148, %152 : vector<16x32xi1>, vector<16x32xf32>
      %c0_84 = arith.constant 0 : index
      %c0_85 = arith.constant 0 : index
      %154 = vector.load %arg23[%c0_84, %c0_85] : memref<16x32xf32, #tpu.memory_space<vmem>>, vector<16x32xf32>
      tpu.vector_store %arg23[%c0_84, %c0_85], %153 {strides = array<i32>} : memref<16x32xf32, #tpu.memory_space<vmem>>, vector<16x32xf32>,
    } else {
    }
    %c0 = arith.constant 0 : index
    %c0_1 = arith.constant 0 : index
    %3 = vector.load %arg23[%c0, %c0_1] : memref<16x32xf32, #tpu.memory_space<vmem>>, vector<16x32xf32>
    %c0_2 = arith.constant 0 : index
    %c0_3 = arith.constant 0 : index
    %c0_4 = arith.constant 0 : index
    %4 = vector.load %arg9[%c0_2, %c0_3, %c0_4] : memref<1x32x32xf32, #tpu.memory_space<vmem>>, vector<1x32x32xf32>
    %5 = vector.shape_cast %4 : vector<1x32x32xf32> to vector<32x32xf32>
    %cst = arith.constant dense<0.000000e+00> : vector<16x32xf32>
    %6 = tpu.matmul %3, %5, %cst {dimension_numbers = #tpu.dot_dimension_numbers<[1], [0], [0], [1], [0, 0, 1, 1], [], []>} : vector<16x32xf32>, vector<32x32xf32>, vector<16x32xf32> -> vector<16x32xf32>
    %c0_5 = arith.constant 0 : index
    %c0_6 = arith.constant 0 : index
    %c0_7 = arith.constant 0 : index
    %7 = vector.load %arg10[%c0_5, %c0_6, %c0_7] : memref<1x1x32xf32, #tpu.memory_space<vmem>>, vector<1x1x32xf32>
    %8 = vector.shape_cast %7 : vector<1x1x32xf32> to vector<1x32xf32>
    %9 = vector.broadcast %8 : vector<1x32xf32> to vector<16x32xf32>
    %10 = arith.addf %6, %9 : vector<16x32xf32>
    %c0_8 = arith.constant 0 : index
    %c0_9 = arith.constant 0 : index
    %c0_10 = arith.constant 0 : index
    %11 = vector.load %arg11[%c0_8, %c0_9, %c0_10] : memref<1x1x32xf32, #tpu.memory_space<vmem>>, vector<1x1x32xf32>
    %12 = vector.shape_cast %11 : vector<1x1x32xf32> to vector<1x32xf32>
    %c0_11 = arith.constant 0 : index
    %c0_12 = arith.constant 0 : index
    %c0_13 = arith.constant 0 : index
    %13 = vector.load %arg12[%c0_11, %c0_12, %c0_13] : memref<1x1x32xf32, #tpu.memory_space<vmem>>, vector<1x1x32xf32>
    %14 = vector.shape_cast %13 : vector<1x1x32xf32> to vector<1x32xf32>
    %cst_14 = arith.constant dense<0.000000e+00> : vector<16xf32>
    %15 = vector.multi_reduction <add>, %10, %cst_14 [1] : vector<16x32xf32> to vector<16xf32>
    %16 = vector.shape_cast %15 : vector<16xf32> to vector<16x1xf32>
    %cst_15 = arith.constant 3.200000e+01 : f32
    %17 = vector.broadcast %cst_15 : f32 to vector<16x1xf32>
    %18 = arith.divf %16, %17 : vector<16x1xf32>
    %19 = vector.broadcast %18 : vector<16x1xf32> to vector<16x32xf32>
    %20 = arith.subf %10, %19 : vector<16x32xf32>
    %21 = arith.mulf %20, %20 : vector<16x32xf32>
    %cst_16 = arith.constant dense<0.000000e+00> : vector<16xf32>
    %22 = vector.multi_reduction <add>, %21, %cst_16 [1] : vector<16x32xf32> to vector<16xf32>
    %23 = vector.shape_cast %22 : vector<16xf32> to vector<16x1xf32>
    %cst_17 = arith.constant 3.200000e+01 : f32
    %24 = vector.broadcast %cst_17 : f32 to vector<16x1xf32>
    %25 = arith.divf %23, %24 : vector<16x1xf32>
    %26 = vector.broadcast %18 : vector<16x1xf32> to vector<16x32xf32>
    %27 = arith.subf %10, %26 : vector<16x32xf32>
    %cst_18 = arith.constant 9.99999974E-6 : f32
    %28 = vector.broadcast %cst_18 : f32 to vector<16x1xf32>
    %29 = arith.addf %25, %28 : vector<16x1xf32>
    %30 = math.rsqrt %29 : vector<16x1xf32>
    %31 = vector.broadcast %30 : vector<16x1xf32> to vector<16x32xf32>
    %32 = arith.mulf %27, %31 : vector<16x32xf32>
    %33 = vector.broadcast %12 : vector<1x32xf32> to vector<16x32xf32>
    %34 = arith.mulf %32, %33 : vector<16x32xf32>
    %35 = vector.broadcast %14 : vector<1x32xf32> to vector<16x32xf32>
    %36 = arith.addf %34, %35 : vector<16x32xf32>
    %cst_19 = arith.constant 0.000000e+00 : f32
    %37 = vector.broadcast %cst_19 : f32 to vector<16x32xf32>
    %38 = arith.cmpf ogt, %36, %37 : vector<16x32xf32>
    %cst_20 = arith.constant 2.000000e-01 : f32
    %39 = vector.broadcast %cst_20 : f32 to vector<16x32xf32>
    %40 = arith.mulf %39, %36 : vector<16x32xf32>
    %41 = arith.select %38, %36, %40 : vector<16x32xi1>, vector<16x32xf32>
    %c0_21 = arith.constant 0 : index
    %c0_22 = arith.constant 0 : index
    %c0_23 = arith.constant 0 : index
    %42 = vector.load %arg13[%c0_21, %c0_22, %c0_23] : memref<1x32x32xf32, #tpu.memory_space<vmem>>, vector<1x32x32xf32>
    %43 = vector.shape_cast %42 : vector<1x32x32xf32> to vector<32x32xf32>
    %cst_24 = arith.constant dense<0.000000e+00> : vector<16x32xf32>
    %44 = tpu.matmul %41, %43, %cst_24 {dimension_numbers = #tpu.dot_dimension_numbers<[1], [0], [0], [1], [0, 0, 1, 1], [], []>} : vector<16x32xf32>, vector<32x32xf32>, vector<16x32xf32> -> vector<16x32xf32>
    %c0_25 = arith.constant 0 : index
    %c0_26 = arith.constant 0 : index
    %c0_27 = arith.constant 0 : index
    %45 = vector.load %arg14[%c0_25, %c0_26, %c0_27] : memref<1x1x32xf32, #tpu.memory_space<vmem>>, vector<1x1x32xf32>
    %46 = vector.shape_cast %45 : vector<1x1x32xf32> to vector<1x32xf32>
    %47 = vector.broadcast %46 : vector<1x32xf32> to vector<16x32xf32>
    %48 = arith.addf %44, %47 : vector<16x32xf32>
    %c0_28 = arith.constant 0 : index
    %c0_29 = arith.constant 0 : index
    %c0_30 = arith.constant 0 : index
    %49 = vector.load %arg15[%c0_28, %c0_29, %c0_30] : memref<1x1x32xf32, #tpu.memory_space<vmem>>, vector<1x1x32xf32>
    %50 = vector.shape_cast %49 : vector<1x1x32xf32> to vector<1x32xf32>
    %c0_31 = arith.constant 0 : index
    %c0_32 = arith.constant 0 : index
    %c0_33 = arith.constant 0 : index
    %51 = vector.load %arg16[%c0_31, %c0_32, %c0_33] : memref<1x1x32xf32, #tpu.memory_space<vmem>>, vector<1x1x32xf32>
    %52 = vector.shape_cast %51 : vector<1x1x32xf32> to vector<1x32xf32>
    %cst_34 = arith.constant dense<0.000000e+00> : vector<16xf32>
    %53 = vector.multi_reduction <add>, %48, %cst_34 [1] : vector<16x32xf32> to vector<16xf32>
    %54 = vector.shape_cast %53 : vector<16xf32> to vector<16x1xf32>
    %cst_35 = arith.constant 3.200000e+01 : f32
    %55 = vector.broadcast %cst_35 : f32 to vector<16x1xf32>
    %56 = arith.divf %54, %55 : vector<16x1xf32>
    %57 = vector.broadcast %56 : vector<16x1xf32> to vector<16x32xf32>
    %58 = arith.subf %48, %57 : vector<16x32xf32>
    %59 = arith.mulf %58, %58 : vector<16x32xf32>
    %cst_36 = arith.constant dense<0.000000e+00> : vector<16xf32>
    %60 = vector.multi_reduction <add>, %59, %cst_36 [1] : vector<16x32xf32> to vector<16xf32>
    %61 = vector.shape_cast %60 : vector<16xf32> to vector<16x1xf32>
    %cst_37 = arith.constant 3.200000e+01 : f32
    %62 = vector.broadcast %cst_37 : f32 to vector<16x1xf32>
    %63 = arith.divf %61, %62 : vector<16x1xf32>
    %64 = vector.broadcast %56 : vector<16x1xf32> to vector<16x32xf32>
    %65 = arith.subf %48, %64 : vector<16x32xf32>
    %cst_38 = arith.constant 9.99999974E-6 : f32
    %66 = vector.broadcast %cst_38 : f32 to vector<16x1xf32>
    %67 = arith.addf %63, %66 : vector<16x1xf32>
    %68 = math.rsqrt %67 : vector<16x1xf32>
    %69 = vector.broadcast %68 : vector<16x1xf32> to vector<16x32xf32>
    %70 = arith.mulf %65, %69 : vector<16x32xf32>
    %71 = vector.broadcast %50 : vector<1x32xf32> to vector<16x32xf32>
    %72 = arith.mulf %70, %71 : vector<16x32xf32>
    %73 = vector.broadcast %52 : vector<1x32xf32> to vector<16x32xf32>
    %74 = arith.addf %72, %73 : vector<16x32xf32>
    %75 = vector.shape_cast %74 : vector<16x32xf32> to vector<2x8x32xf32>
    %cst_39 = arith.constant dense<0.000000e+00> : vector<2x32xf32>
    %76 = vector.multi_reduction <add>, %75, %cst_39 [1] : vector<2x8x32xf32> to vector<2x32xf32>
    %cst_40 = arith.constant 8.000000e+00 : f32
    %77 = vector.broadcast %cst_40 : f32 to vector<2x32xf32>
    %78 = arith.divf %76, %77 : vector<2x32xf32>
    %c0_41 = arith.constant 0 : index
    %c0_42 = arith.constant 0 : index
    %c0_43 = arith.constant 0 : index
    %79 = vector.load %arg17[%c0_41, %c0_42, %c0_43] : memref<1x32x8xf32, #tpu.memory_space<vmem>>, vector<1x32x8xf32>
    %80 = vector.shape_cast %79 : vector<1x32x8xf32> to vector<32x8xf32>
    %cst_44 = arith.constant dense<0.000000e+00> : vector<2x8xf32>
    %81 = tpu.matmul %78, %80, %cst_44 {dimension_numbers = #tpu.dot_dimension_numbers<[1], [0], [0], [1], [0, 0, 1, 1], [], []>} : vector<2x32xf32>, vector<32x8xf32>, vector<2x8xf32> -> vector<2x8xf32>
    %c0_45 = arith.constant 0 : index
    %c0_46 = arith.constant 0 : index
    %c0_47 = arith.constant 0 : index
    %82 = vector.load %arg18[%c0_45, %c0_46, %c0_47] : memref<1x1x8xf32, #tpu.memory_space<vmem>>, vector<1x1x8xf32>
    %83 = vector.shape_cast %82 : vector<1x1x8xf32> to vector<1x8xf32>
    %84 = vector.broadcast %83 : vector<1x8xf32> to vector<2x8xf32>
    %85 = arith.addf %81, %84 : vector<2x8xf32>
    %cst_48 = arith.constant 0.000000e+00 : f32
    %86 = vector.broadcast %cst_48 : f32 to vector<2x8xf32>
    %87 = arith.maximumf %85, %86 : vector<2x8xf32>
    %c0_49 = arith.constant 0 : index
    %c0_50 = arith.constant 0 : index
    %c0_51 = arith.constant 0 : index
    %88 = vector.load %arg19[%c0_49, %c0_50, %c0_51] : memref<1x8x32xf32, #tpu.memory_space<vmem>>, vector<1x8x32xf32>
    %89 = vector.shape_cast %88 : vector<1x8x32xf32> to vector<8x32xf32>
    %cst_52 = arith.constant dense<0.000000e+00> : vector<2x32xf32>
    %90 = tpu.matmul %87, %89, %cst_52 {dimension_numbers = #tpu.dot_dimension_numbers<[1], [0], [0], [1], [0, 0, 1, 1], [], []>} : vector<2x8xf32>, vector<8x32xf32>, vector<2x32xf32> -> vector<2x32xf32>
    %c0_53 = arith.constant 0 : index
    %c0_54 = arith.constant 0 : index
    %c0_55 = arith.constant 0 : index
    %91 = vector.load %arg20[%c0_53, %c0_54, %c0_55] : memref<1x1x32xf32, #tpu.memory_space<vmem>>, vector<1x1x32xf32>
    %92 = vector.shape_cast %91 : vector<1x1x32xf32> to vector<1x32xf32>
    %93 = vector.broadcast %92 : vector<1x32xf32> to vector<2x32xf32>
    %94 = arith.addf %90, %93 : vector<2x32xf32>
    %95 = arith.negf %94 : vector<2x32xf32>
    %96 = math.exp %95 : vector<2x32xf32>
    %cst_56 = arith.constant 1.000000e+00 : f32
    %97 = vector.broadcast %cst_56 : f32 to vector<2x32xf32>
    %98 = arith.addf %97, %96 : vector<2x32xf32>
    %99 = arith.divf %97, %98 : vector<2x32xf32>
    %100 = vector.shape_cast %99 : vector<2x32xf32> to vector<2x1x32xf32>
    %101 = vector.broadcast %100 : vector<2x1x32xf32> to vector<2x8x32xf32>
    %102 = arith.mulf %75, %101 : vector<2x8x32xf32>
    %103 = vector.shape_cast %102 : vector<2x8x32xf32> to vector<16x32xf32>
    %c0_57 = arith.constant 0 : index
    %c0_58 = arith.constant 0 : index
    %c0_59 = arith.constant 0 : index
    %104 = vector.load %arg21[%c0_57, %c0_58, %c0_59] : memref<1x1x1xf32, #tpu.memory_space<vmem>>, vector<1x1x1xf32>
    %105 = vector.shape_cast %104 : vector<1x1x1xf32> to vector<1x1xf32>
    %106 = vector.broadcast %105 : vector<1x1xf32> to vector<16x32xf32>
    %107 = arith.mulf %103, %106 : vector<16x32xf32>
    %108 = arith.addf %107, %3 : vector<16x32xf32>
    %cst_60 = arith.constant 0.000000e+00 : f32
    %109 = vector.broadcast %cst_60 : f32 to vector<16x32xf32>
    %110 = arith.cmpf ogt, %108, %109 : vector<16x32xf32>
    %cst_61 = arith.constant 2.000000e-01 : f32
    %111 = vector.broadcast %cst_61 : f32 to vector<16x32xf32>
    %112 = arith.mulf %111, %108 : vector<16x32xf32>
    %113 = arith.select %110, %108, %112 : vector<16x32xi1>, vector<16x32xf32>
    %c0_62 = arith.constant 0 : index
    %c0_63 = arith.constant 0 : index
    %114 = vector.load %arg23[%c0_62, %c0_63] : memref<16x32xf32, #tpu.memory_space<vmem>>, vector<16x32xf32>
    tpu.vector_store %arg23[%c0_62, %c0_63], %113 {strides = array<i32>} : memref<16x32xf32, #tpu.memory_space<vmem>>, vector<16x32xf32>,
    %c1_i32 = arith.constant 1 : i32
    %115 = arith.cmpi eq, %arg1, %c1_i32 : i32
    %116 = arith.extui %115 : i1 to i32
    %c0_i32_64 = arith.constant 0 : i32
    %117 = arith.cmpi ne, %116, %c0_i32_64 : i32
    scf.if %117 {
      %c0_65 = arith.constant 0 : index
      %c0_66 = arith.constant 0 : index
      %118 = vector.load %arg23[%c0_65, %c0_66] : memref<16x32xf32, #tpu.memory_space<vmem>>, vector<16x32xf32>
      %c0_67 = arith.constant 0 : index
      %c0_68 = arith.constant 0 : index
      %119 = vector.load %arg7[%c0_67, %c0_68] : memref<32x128xf32, #tpu.memory_space<vmem>>, vector<32x128xf32>
      %cst_69 = arith.constant dense<0.000000e+00> : vector<16x128xf32>
      %120 = tpu.matmul %118, %119, %cst_69 {dimension_numbers = #tpu.dot_dimension_numbers<[1], [0], [0], [1], [0, 0, 1, 1], [], []>} : vector<16x32xf32>, vector<32x128xf32>, vector<16x128xf32> -> vector<16x128xf32>
      %c0_70 = arith.constant 0 : index
      %c0_71 = arith.constant 0 : index
      %121 = vector.load %arg8[%c0_70, %c0_71] : memref<1x128xf32, #tpu.memory_space<vmem>>, vector<1x128xf32>
      %122 = vector.broadcast %121 : vector<1x128xf32> to vector<16x128xf32>
      %123 = arith.addf %120, %122 : vector<16x128xf32>
      %124 = vector.shape_cast %123 : vector<16x128xf32> to vector<2x8x128xf32>
      %c0_72 = arith.constant 0 : index
      %c0_73 = arith.constant 0 : index
      %c0_74 = arith.constant 0 : index
      %125 = vector.load %arg22[%c0_72, %c0_73, %c0_74] : memref<2x8x128xf32, #tpu.memory_space<vmem>>, vector<2x8x128xf32>
      tpu.vector_store %arg22[%c0_72, %c0_73, %c0_74], %124 {strides = array<i32>} : memref<2x8x128xf32, #tpu.memory_space<vmem>>, vector<2x8x128xf32>,
    } else {
    }
    return
  }
  func.func @transform_0(%arg0: i32, %arg1: i32) -> (i32, i32, i32) {
    %c0_i32 = arith.constant 0 : i32
    %c0_i32_0 = arith.constant 0 : i32
    %c0_i32_1 = arith.constant 0 : i32
    return %arg0, %c0_i32, %c0_i32_0 : i32, i32, i32
  }
  func.func @transform_1(%arg0: i32, %arg1: i32) -> (i32, i32) {
    %c0_i32 = arith.constant 0 : i32
    %c0_i32_0 = arith.constant 0 : i32
    %c0_i32_1 = arith.constant 0 : i32
    return %c0_i32, %c0_i32_0 : i32, i32
  }
  func.func @transform_2(%arg0: i32, %arg1: i32) -> (i32, i32) {
    %c0_i32 = arith.constant 0 : i32
    %c0_i32_0 = arith.constant 0 : i32
    %c0_i32_1 = arith.constant 0 : i32
    return %c0_i32, %c0_i32_0 : i32, i32
  }
  func.func @transform_3(%arg0: i32, %arg1: i32) -> (i32, i32) {
    %c0_i32 = arith.constant 0 : i32
    %c0_i32_0 = arith.constant 0 : i32
    %c0_i32_1 = arith.constant 0 : i32
    return %c0_i32, %c0_i32_0 : i32, i32
  }
  func.func @transform_4(%arg0: i32, %arg1: i32) -> (i32, i32) {
    %c0_i32 = arith.constant 0 : i32
    %c0_i32_0 = arith.constant 0 : i32
    %c0_i32_1 = arith.constant 0 : i32
    return %c0_i32, %c0_i32_0 : i32, i32
  }
  func.func @transform_5(%arg0: i32, %arg1: i32) -> (i32, i32) {
    %c0_i32 = arith.constant 0 : i32
    %c0_i32_0 = arith.constant 0 : i32
    %c0_i32_1 = arith.constant 0 : i32
    return %c0_i32, %c0_i32_0 : i32, i32
  }
  func.func @transform_6(%arg0: i32, %arg1: i32) -> (i32, i32) {
    %c0_i32 = arith.constant 0 : i32
    %c0_i32_0 = arith.constant 0 : i32
    %c0_i32_1 = arith.constant 0 : i32
    return %c0_i32, %c0_i32_0 : i32, i32
  }
  func.func @transform_7(%arg0: i32, %arg1: i32) -> (i32, i32, i32) {
    %c0_i32 = arith.constant 0 : i32
    %c0_i32_0 = arith.constant 0 : i32
    %c0_i32_1 = arith.constant 0 : i32
    return %arg1, %c0_i32, %c0_i32_0 : i32, i32, i32
  }
  func.func @transform_8(%arg0: i32, %arg1: i32) -> (i32, i32, i32) {
    %c0_i32 = arith.constant 0 : i32
    %c0_i32_0 = arith.constant 0 : i32
    %c0_i32_1 = arith.constant 0 : i32
    return %arg1, %c0_i32, %c0_i32_0 : i32, i32, i32
  }
  func.func @transform_9(%arg0: i32, %arg1: i32) -> (i32, i32, i32) {
    %c0_i32 = arith.constant 0 : i32
    %c0_i32_0 = arith.constant 0 : i32
    %c0_i32_1 = arith.constant 0 : i32
    return %arg1, %c0_i32, %c0_i32_0 : i32, i32, i32
  }
  func.func @transform_10(%arg0: i32, %arg1: i32) -> (i32, i32, i32) {
    %c0_i32 = arith.constant 0 : i32
    %c0_i32_0 = arith.constant 0 : i32
    %c0_i32_1 = arith.constant 0 : i32
    return %arg1, %c0_i32, %c0_i32_0 : i32, i32, i32
  }
  func.func @transform_11(%arg0: i32, %arg1: i32) -> (i32, i32, i32) {
    %c0_i32 = arith.constant 0 : i32
    %c0_i32_0 = arith.constant 0 : i32
    %c0_i32_1 = arith.constant 0 : i32
    return %arg1, %c0_i32, %c0_i32_0 : i32, i32, i32
  }
  func.func @transform_12(%arg0: i32, %arg1: i32) -> (i32, i32, i32) {
    %c0_i32 = arith.constant 0 : i32
    %c0_i32_0 = arith.constant 0 : i32
    %c0_i32_1 = arith.constant 0 : i32
    return %arg1, %c0_i32, %c0_i32_0 : i32, i32, i32
  }
  func.func @transform_13(%arg0: i32, %arg1: i32) -> (i32, i32, i32) {
    %c0_i32 = arith.constant 0 : i32
    %c0_i32_0 = arith.constant 0 : i32
    %c0_i32_1 = arith.constant 0 : i32
    return %arg1, %c0_i32, %c0_i32_0 : i32, i32, i32
  }
  func.func @transform_14(%arg0: i32, %arg1: i32) -> (i32, i32, i32) {
    %c0_i32 = arith.constant 0 : i32
    %c0_i32_0 = arith.constant 0 : i32
    %c0_i32_1 = arith.constant 0 : i32
    return %arg1, %c0_i32, %c0_i32_0 : i32, i32, i32
  }
  func.func @transform_15(%arg0: i32, %arg1: i32) -> (i32, i32, i32) {
    %c0_i32 = arith.constant 0 : i32
    %c0_i32_0 = arith.constant 0 : i32
    %c0_i32_1 = arith.constant 0 : i32
    return %arg1, %c0_i32, %c0_i32_0 : i32, i32, i32
  }
  func.func @transform_16(%arg0: i32, %arg1: i32) -> (i32, i32, i32) {
    %c0_i32 = arith.constant 0 : i32
    %c0_i32_0 = arith.constant 0 : i32
    %c0_i32_1 = arith.constant 0 : i32
    return %arg1, %c0_i32, %c0_i32_0 : i32, i32, i32
  }
  func.func @transform_17(%arg0: i32, %arg1: i32) -> (i32, i32, i32) {
    %c0_i32 = arith.constant 0 : i32
    %c0_i32_0 = arith.constant 0 : i32
    %c0_i32_1 = arith.constant 0 : i32
    return %arg1, %c0_i32, %c0_i32_0 : i32, i32, i32
  }
  func.func @transform_18(%arg0: i32, %arg1: i32) -> (i32, i32, i32) {
    %c0_i32 = arith.constant 0 : i32
    %c0_i32_0 = arith.constant 0 : i32
    %c0_i32_1 = arith.constant 0 : i32
    return %arg1, %c0_i32, %c0_i32_0 : i32, i32, i32
  }
  func.func @transform_19(%arg0: i32, %arg1: i32) -> (i32, i32, i32) {
    %c0_i32 = arith.constant 0 : i32
    %c0_i32_0 = arith.constant 0 : i32
    %c0_i32_1 = arith.constant 0 : i32
    return %arg1, %c0_i32, %c0_i32_0 : i32, i32, i32
  }
  func.func @transform_20(%arg0: i32, %arg1: i32) -> (i32, i32, i32) {
    %c0_i32 = arith.constant 0 : i32
    %c0_i32_0 = arith.constant 0 : i32
    %c0_i32_1 = arith.constant 0 : i32
    return %arg0, %c0_i32, %c0_i32_0 : i32, i32, i32
  }
}

</mosaic_0001>

<llo_original>
// kernel: tpu_custom_call.1
$region0: #{tpu_custom_call.1}
  #allocation0 [shape = 'u32[]', space=smem, size = 0x4, offset = 0x4, fixed_abs, tag = 'smem constant byte address 0x4 - core index']
  #allocation1 [shape = 'u32[144,128]{1,0:T(1,128)}', space=vmem, size = 0x12000, scoped, tag = 'internal scratch']
  #allocation2 [shape = 'f32[16,32]{1,0:T(8,128)}', space=vmem, size = 0x2000, scoped, tag = 'scratch operand']
  %s0 = inlined_call_operand.vmem [shape: f32[2,8,4], index: 0, kind: input, shape index: {}]
  %s1 = inlined_call_operand.hbm [shape: f32[4,32], index: 1, kind: input, shape index: {}]
  %s2 = inlined_call_operand.hbm [shape: f32[1,32], index: 2, kind: input, shape index: {}]
  %s3 = inlined_call_operand.hbm [shape: f32[1,32], index: 3, kind: input, shape index: {}]
  %s4 = inlined_call_operand.hbm [shape: f32[1,32], index: 4, kind: input, shape index: {}]
  %s5 = inlined_call_operand.hbm [shape: f32[32,128], index: 5, kind: input, shape index: {}]
  %s6 = inlined_call_operand.hbm [shape: f32[1,128], index: 6, kind: input, shape index: {}]
  %s7 = inlined_call_operand.vmem [shape: f32[2,32,32], index: 7, kind: input, shape index: {}]
  %s8 = inlined_call_operand.hbm [shape: f32[2,1,32], index: 8, kind: input, shape index: {}]
  %s9 = inlined_call_operand.hbm [shape: f32[2,1,32], index: 9, kind: input, shape index: {}]
  %s10 = inlined_call_operand.hbm [shape: f32[2,1,32], index: 10, kind: input, shape index: {}]
  %s11 = inlined_call_operand.vmem [shape: f32[2,32,32], index: 11, kind: input, shape index: {}]
  %s12 = inlined_call_operand.hbm [shape: f32[2,1,32], index: 12, kind: input, shape index: {}]
  %s13 = inlined_call_operand.hbm [shape: f32[2,1,32], index: 13, kind: input, shape index: {}]
  %s14 = inlined_call_operand.hbm [shape: f32[2,1,32], index: 14, kind: input, shape index: {}]
  %s15 = inlined_call_operand.vmem [shape: f32[2,32,8], index: 15, kind: input, shape index: {}]
  %s16 = inlined_call_operand.vmem [shape: f32[2,1,8], index: 16, kind: input, shape index: {}]
  %s17 = inlined_call_operand.vmem [shape: f32[2,8,32], index: 17, kind: input, shape index: {}]
  %s18 = inlined_call_operand.vmem [shape: f32[2,1,32], index: 18, kind: input, shape index: {}]
  %s19 = inlined_call_operand.vmem [shape: f32[2,1,1], index: 19, kind: input, shape index: {}]
  %s20 = inlined_call_operand.hbm [shape: f32[2,8,128], index: 20, kind: output, shape index: {}]
  %s21 = sld [smem:[#allocation0]]
  $region169: #{tpu_custom_call.1} parent=0
    _
  %s23 = ssub.s32 1, %s21
  %s24 = scalar_select 0, %s23, %s21
  $region1: #{tpu_custom_call.1} parent=0
    #allocation3 [shape = 'u8[2048]{0}', space=vmem, size = 0x800, scoped, tag = 'input window, operand 1, single buffered']
    #allocation4 [shape = 's32[2]{0}', space=sflag, size = 0x8, scoped, tag = 'scoped memory for tpu_custom_call.1']
    #allocation5 [shape = 's32[2]{0}', space=sflag, size = 0x8, scoped, tag = 'scoped memory for tpu_custom_call.1']
    #allocation6 [shape = 'u8[512]{0}', space=vmem, size = 0x400, scoped, tag = 'input window, operand 2, single buffered']
    #allocation7 [shape = 's32[1]{0}', space=sflag, size = 0x4, scoped, tag = 'scoped memory for tpu_custom_call.1']
    #allocation8 [shape = 'u8[512]{0}', space=vmem, size = 0x400, scoped, tag = 'input window, operand 3, single buffered']
    #allocation9 [shape = 'u8[512]{0}', space=vmem, size = 0x400, scoped, tag = 'input window, operand 4, single buffered']
    #allocation10 [shape = 's32[1]{0}', space=sflag, size = 0x4, scoped, tag = 'scoped memory for tpu_custom_call.1']
    #allocation11 [shape = 'u8[16384]{0}', space=vmem, size = 0x4000, scoped, tag = 'input window, operand 5, single buffered']
    #allocation12 [shape = 'u8[512]{0}', space=vmem, size = 0x400, scoped, tag = 'input window, operand 6, single buffered']
    #allocation13 [shape = 's32[1]{0}', space=sflag, size = 0x4, scoped, tag = 'scoped memory for tpu_custom_call.1']
    #allocation14 [shape = 'u8[1024]{0}', space=vmem, size = 0x400, scoped, tag = 'input window, operand 8']
    #allocation15 [shape = 'u8[1024]{0}', space=vmem, size = 0x400, scoped, tag = 'input window, operand 9']
    #allocation16 [shape = 'u8[1024]{0}', space=vmem, size = 0x400, scoped, tag = 'input window, operand 10']
    #allocation17 [shape = 'u8[1024]{0}', space=vmem, size = 0x400, scoped, tag = 'input window, operand 12']
    #allocation18 [shape = 'u8[1024]{0}', space=vmem, size = 0x400, scoped, tag = 'input window, operand 13']
    #allocation19 [shape = 'u8[1024]{0}', space=vmem, size = 0x400, scoped, tag = 'input window, operand 14']
    #allocation20 [shape = 'u8[8192]{0}', space=vmem, size = 0x2000, scoped, tag = 'output window, operand 0, single buffered']
    %25 = vsyncpa [#allocation4], 0
    %26 = vsyncpa [#allocation7], 0
    %27 = vsyncpa [#allocation10], 0
    %28 = vsyncpa [#allocation13], 0
    %29 = vsyncpa [#allocation5], 0
    loop: start=0, step=1, limit=4
    $region2: #{tpu_custom_call.1} parent=1 // loop_pre_header
      _
    $region3: #{tpu_custom_call.1} parent=1 // loop_header
      %s31 = sphi 0, %s35
      %p32 = scmp.ge.s32.totalorder %s31, 4
      %s38 = sphi 0, %s50
      %s39 = sphi 0, %s46
      %s40 = sphi 0, %s38
      %s41 = sphi 0, %s39
      %s42 = sphi 0, %s40
      %s43 = sphi 0, %s41
      %s53 = sphi 0, %s55
      %s56 = sphi 0, %s53
      %s57 = sphi 0, %s56
      %s73 = sphi 0, %s57
      %s77 = sphi 0, %s77
      %s79 = sphi 0, %s77
      %s80 = sphi 0, %s79
      %s94 = sphi 0, %s80
      %s98 = sphi 0, %s98
      %s100 = sphi 0, %s98
      %s101 = sphi 0, %s100
      %s115 = sphi 0, %s101
      %s119 = sphi 0, %s119
      %s121 = sphi 0, %s119
      %s122 = sphi 0, %s121
      %s136 = sphi 0, %s122
      %s140 = sphi 0, %s140
      %s142 = sphi 0, %s140
      %s143 = sphi 0, %s142
      %s157 = sphi 0, %s143
      %s161 = sphi 0, %s161
      %s163 = sphi 0, %s161
      %s164 = sphi 0, %s163
      %s178 = sphi 0, %s164
      %s182 = sphi 0, %s182
      %s184 = sphi 0, %s182
      %s185 = sphi 0, %s184
      %s199 = sphi 0, %s185
      %s205 = sphi 0, %s207
      %s208 = sphi 0, %s205
      %s209 = sphi 0, %s208
      %s225 = sphi 0, %s209
      %s231 = sphi 0, %s233
      %s234 = sphi 0, %s231
      %s235 = sphi 0, %s234
      %s251 = sphi 0, %s235
      %s257 = sphi 0, %s259
      %s260 = sphi 0, %s257
      %s261 = sphi 0, %s260
      %s277 = sphi 0, %s261
      %s283 = sphi 0, %s285
      %s286 = sphi 0, %s283
      %s287 = sphi 0, %s286
      %s303 = sphi 0, %s287
      %s309 = sphi 0, %s311
      %s312 = sphi 0, %s309
      %s313 = sphi 0, %s312
      %s329 = sphi 0, %s313
      %s335 = sphi 0, %s337
      %s338 = sphi 0, %s335
      %s339 = sphi 0, %s338
      %s355 = sphi 0, %s339
      %s361 = sphi 0, %s363
      %s364 = sphi 0, %s361
      %s365 = sphi 0, %s364
      %s381 = sphi 0, %s365
      %s387 = sphi 0, %s389
      %s390 = sphi 0, %s387
      %s391 = sphi 0, %s390
      %s407 = sphi 0, %s391
      %s413 = sphi 0, %s415
      %s416 = sphi 0, %s413
      %s417 = sphi 0, %s416
      %s433 = sphi 0, %s417
      %s439 = sphi 0, %s441
      %s442 = sphi 0, %s439
      %s443 = sphi 0, %s442
      %s459 = sphi 0, %s443
      %s465 = sphi 0, %s467
      %s468 = sphi 0, %s465
      %s469 = sphi 0, %s468
      %s485 = sphi 0, %s469
      %s491 = sphi 0, %s493
      %s494 = sphi 0, %s491
      %s495 = sphi 0, %s494
      %s511 = sphi 0, %s495
      %s517 = sphi 0, %s519
      %s520 = sphi 0, %s517
      %s521 = sphi 0, %s520
      %s537 = sphi 0, %s521
      %s543 = sphi 0, %s545
      %s546 = sphi 0, %s543
      %s547 = sphi 0, %s546
      %s563 = sphi 0, %s547
    $region4: #{tpu_custom_call.1} parent=1 // loop_header_branch
      %34 = sbr.rel (%p32) target = $region8
    $region5: #{tpu_custom_call.1} parent=1 // loop_body
      %s36 = ssub.s32 %s31, 1
      %s37 = ssub.s32 %s31, 2
      %s44 = sadd.s32 1, %s39
      %p45 = scmp.ge.s32.totalorder %s44, 2
      %s46 = scalar_select %p45, 0, %s44
      %s47 = sadd.s32 1, %s38
      %s48 = scalar_select %p45, %s47, %s38
      %p49 = scmp.ge.s32.totalorder %s48, 1
      %s50 = scalar_select %p49, 0, %s48
      %s51 = ssub.s32 %s38, %s50
      %p52 = scmp.eq.s32.totalorder %s51, 0
      %s54 = sadd.s32 %s53, 1
      %s55 = scalar_select %p52, %s53, %s54
      %p58 = pneg %p52
      %p59 = scmp.eq.s32.totalorder %s31, 1
      %p60 = por %p58, %p59
      %p61 = scmp.ne.s32.totalorder %s53, %s56
      %p62 = scmp.eq.s32.totalorder %s31, 0
      %p63 = por %p61, %p62
      %p64 = scmp.ne.s32.totalorder %s53, %s56
      %p65 = scmp.eq.s32.totalorder %s36, 1
      %p66 = por %p64, %p65
      %p67 = scmp.ne.s32.totalorder %s56, %s57
      %p68 = scmp.eq.s32.totalorder %s36, 0
      %p69 = por %p67, %p68
      %p70 = scmp.ne.s32.totalorder %s56, %s57
      %p71 = scmp.eq.s32.totalorder %s37, 1
      %p72 = por %p70, %p71
      %p74 = scmp.ne.s32.totalorder %s57, %s73
      %p75 = scmp.eq.s32.totalorder %s37, 0
      %p76 = por %p74, %p75
      %s78 = sadd.s32 %s77, 1
      %p81 = scmp.eq.s32.totalorder %s31, 1
      %p82 = scmp.ne.s32.totalorder %s77, %s79
      %p83 = scmp.eq.s32.totalorder %s31, 0
      %p84 = por %p82, %p83
      %p85 = scmp.ne.s32.totalorder %s77, %s79
      %p86 = scmp.eq.s32.totalorder %s36, 1
      %p87 = por %p85, %p86
      %p88 = scmp.ne.s32.totalorder %s79, %s80
      %p89 = scmp.eq.s32.totalorder %s36, 0
      %p90 = por %p88, %p89
      %p91 = scmp.ne.s32.totalorder %s79, %s80
      %p92 = scmp.eq.s32.totalorder %s37, 1
      %p93 = por %p91, %p92
      %p95 = scmp.ne.s32.totalorder %s80, %s94
      %p96 = scmp.eq.s32.totalorder %s37, 0
      %p97 = por %p95, %p96
      %s99 = sadd.s32 %s98, 1
      %p102 = scmp.eq.s32.totalorder %s31, 1
      %p103 = scmp.ne.s32.totalorder %s98, %s100
      %p104 = scmp.eq.s32.totalorder %s31, 0
      %p105 = por %p103, %p104
      %p106 = scmp.ne.s32.totalorder %s98, %s100
      %p107 = scmp.eq.s32.totalorder %s36, 1
      %p108 = por %p106, %p107
      %p109 = scmp.ne.s32.totalorder %s100, %s101
      %p110 = scmp.eq.s32.totalorder %s36, 0
      %p111 = por %p109, %p110
      %p112 = scmp.ne.s32.totalorder %s100, %s101
      %p113 = scmp.eq.s32.totalorder %s37, 1
      %p114 = por %p112, %p113
      %p116 = scmp.ne.s32.totalorder %s101, %s115
      %p117 = scmp.eq.s32.totalorder %s37, 0
      %p118 = por %p116, %p117
      %s120 = sadd.s32 %s119, 1
      %p123 = scmp.eq.s32.totalorder %s31, 1
      %p124 = scmp.ne.s32.totalorder %s119, %s121
      %p125 = scmp.eq.s32.totalorder %s31, 0
      %p126 = por %p124, %p125
      %p127 = scmp.ne.s32.totalorder %s119, %s121
      %p128 = scmp.eq.s32.totalorder %s36, 1
      %p129 = por %p127, %p128
      %p130 = scmp.ne.s32.totalorder %s121, %s122
      %p131 = scmp.eq.s32.totalorder %s36, 0
      %p132 = por %p130, %p131
      %p133 = scmp.ne.s32.totalorder %s121, %s122
      %p134 = scmp.eq.s32.totalorder %s37, 1
      %p135 = por %p133, %p134
      %p137 = scmp.ne.s32.totalorder %s122, %s136
      %p138 = scmp.eq.s32.totalorder %s37, 0
      %p139 = por %p137, %p138
      %s141 = sadd.s32 %s140, 1
      %p144 = scmp.eq.s32.totalorder %s31, 1
      %p145 = scmp.ne.s32.totalorder %s140, %s142
      %p146 = scmp.eq.s32.totalorder %s31, 0
      %p147 = por %p145, %p146
      %p148 = scmp.ne.s32.totalorder %s140, %s142
      %p149 = scmp.eq.s32.totalorder %s36, 1
      %p150 = por %p148, %p149
      %p151 = scmp.ne.s32.totalorder %s142, %s143
      %p152 = scmp.eq.s32.totalorder %s36, 0
      %p153 = por %p151, %p152
      %p154 = scmp.ne.s32.totalorder %s142, %s143
      %p155 = scmp.eq.s32.totalorder %s37, 1
      %p156 = por %p154, %p155
      %p158 = scmp.ne.s32.totalorder %s143, %s157
      %p159 = scmp.eq.s32.totalorder %s37, 0
      %p160 = por %p158, %p159
      %s162 = sadd.s32 %s161, 1
      %p165 = scmp.eq.s32.totalorder %s31, 1
      %p166 = scmp.ne.s32.totalorder %s161, %s163
      %p167 = scmp.eq.s32.totalorder %s31, 0
      %p168 = por %p166, %p167
      %p169 = scmp.ne.s32.totalorder %s161, %s163
      %p170 = scmp.eq.s32.totalorder %s36, 1
      %p171 = por %p169, %p170
      %p172 = scmp.ne.s32.totalorder %s163, %s164
      %p173 = scmp.eq.s32.totalorder %s36, 0
      %p174 = por %p172, %p173
      %p175 = scmp.ne.s32.totalorder %s163, %s164
      %p176 = scmp.eq.s32.totalorder %s37, 1
      %p177 = por %p175, %p176
      %p179 = scmp.ne.s32.totalorder %s164, %s178
      %p180 = scmp.eq.s32.totalorder %s37, 0
      %p181 = por %p179, %p180
      %s183 = sadd.s32 %s182, 1
      %p186 = scmp.eq.s32.totalorder %s31, 1
      %p187 = scmp.ne.s32.totalorder %s182, %s184
      %p188 = scmp.eq.s32.totalorder %s31, 0
      %p189 = por %p187, %p188
      %p190 = scmp.ne.s32.totalorder %s182, %s184
      %p191 = scmp.eq.s32.totalorder %s36, 1
      %p192 = por %p190, %p191
      %p193 = scmp.ne.s32.totalorder %s184, %s185
      %p194 = scmp.eq.s32.totalorder %s36, 0
      %p195 = por %p193, %p194
      %p196 = scmp.ne.s32.totalorder %s184, %s185
      %p197 = scmp.eq.s32.totalorder %s37, 1
      %p198 = por %p196, %p197
      %p200 = scmp.ne.s32.totalorder %s185, %s199
      %p201 = scmp.eq.s32.totalorder %s37, 0
      %p202 = por %p200, %p201
      %s203 = ssub.s32 %s39, %s46
      %p204 = scmp.eq.s32.totalorder %s203, 0
      %s206 = sadd.s32 %s205, 1
      %s207 = scalar_select %p204, %s205, %s206
      %p210 = pneg %p204
      %p211 = scmp.eq.s32.totalorder %s31, 1
      %p212 = por %p210, %p211
      %p213 = scmp.ne.s32.totalorder %s205, %s208
      %p214 = scmp.eq.s32.totalorder %s31, 0
      %p215 = por %p213, %p214
      %p216 = scmp.ne.s32.totalorder %s205, %s208
      %p217 = scmp.eq.s32.totalorder %s36, 1
      %p218 = por %p216, %p217
      %p219 = scmp.ne.s32.totalorder %s208, %s209
      %p220 = scmp.eq.s32.totalorder %s36, 0
      %p221 = por %p219, %p220
      %p222 = scmp.ne.s32.totalorder %s208, %s209
      %p223 = scmp.eq.s32.totalorder %s37, 1
      %p224 = por %p222, %p223
      %p226 = scmp.ne.s32.totalorder %s209, %s225
      %p227 = scmp.eq.s32.totalorder %s37, 0
      %p228 = por %p226, %p227
      %s229 = ssub.s32 %s39, %s46
      %p230 = scmp.eq.s32.totalorder %s229, 0
      %s232 = sadd.s32 %s231, 1
      %s233 = scalar_select %p230, %s231, %s232
      %p236 = pneg %p230
      %p237 = scmp.eq.s32.totalorder %s31, 1
      %p238 = por %p236, %p237
      %p239 = scmp.ne.s32.totalorder %s231, %s234
      %p240 = scmp.eq.s32.totalorder %s31, 0
      %p241 = por %p239, %p240
      %p242 = scmp.ne.s32.totalorder %s231, %s234
      %p243 = scmp.eq.s32.totalorder %s36, 1
      %p244 = por %p242, %p243
      %p245 = scmp.ne.s32.totalorder %s234, %s235
      %p246 = scmp.eq.s32.totalorder %s36, 0
      %p247 = por %p245, %p246
      %p248 = scmp.ne.s32.totalorder %s234, %s235
      %p249 = scmp.eq.s32.totalorder %s37, 1
      %p250 = por %p248, %p249
      %p252 = scmp.ne.s32.totalorder %s235, %s251
      %p253 = scmp.eq.s32.totalorder %s37, 0
      %p254 = por %p252, %p253
      %s255 = ssub.s32 %s39, %s46
      %p256 = scmp.eq.s32.totalorder %s255, 0
      %s258 = sadd.s32 %s257, 1
      %s259 = scalar_select %p256, %s257, %s258
      %p262 = pneg %p256
      %p263 = scmp.eq.s32.totalorder %s31, 1
      %p264 = por %p262, %p263
      %p265 = scmp.ne.s32.totalorder %s257, %s260
      %p266 = scmp.eq.s32.totalorder %s31, 0
      %p267 = por %p265, %p266
      %p268 = scmp.ne.s32.totalorder %s257, %s260
      %p269 = scmp.eq.s32.totalorder %s36, 1
      %p270 = por %p268, %p269
      %p271 = scmp.ne.s32.totalorder %s260, %s261
      %p272 = scmp.eq.s32.totalorder %s36, 0
      %p273 = por %p271, %p272
      %p274 = scmp.ne.s32.totalorder %s260, %s261
      %p275 = scmp.eq.s32.totalorder %s37, 1
      %p276 = por %p274, %p275
      %p278 = scmp.ne.s32.totalorder %s261, %s277
      %p279 = scmp.eq.s32.totalorder %s37, 0
      %p280 = por %p278, %p279
      %s281 = ssub.s32 %s39, %s46
      %p282 = scmp.eq.s32.totalorder %s281, 0
      %s284 = sadd.s32 %s283, 1
      %s285 = scalar_select %p282, %s283, %s284
      %p288 = pneg %p282
      %p289 = scmp.eq.s32.totalorder %s31, 1
      %p290 = por %p288, %p289
      %p291 = scmp.ne.s32.totalorder %s283, %s286
      %p292 = scmp.eq.s32.totalorder %s31, 0
      %p293 = por %p291, %p292
      %p294 = scmp.ne.s32.totalorder %s283, %s286
      %p295 = scmp.eq.s32.totalorder %s36, 1
      %p296 = por %p294, %p295
      %p297 = scmp.ne.s32.totalorder %s286, %s287
      %p298 = scmp.eq.s32.totalorder %s36, 0
      %p299 = por %p297, %p298
      %p300 = scmp.ne.s32.totalorder %s286, %s287
      %p301 = scmp.eq.s32.totalorder %s37, 1
      %p302 = por %p300, %p301
      %p304 = scmp.ne.s32.totalorder %s287, %s303
      %p305 = scmp.eq.s32.totalorder %s37, 0
      %p306 = por %p304, %p305
      %s307 = ssub.s32 %s39, %s46
      %p308 = scmp.eq.s32.totalorder %s307, 0
      %s310 = sadd.s32 %s309, 1
      %s311 = scalar_select %p308, %s309, %s310
      %p314 = pneg %p308
      %p315 = scmp.eq.s32.totalorder %s31, 1
      %p316 = por %p314, %p315
      %p317 = scmp.ne.s32.totalorder %s309, %s312
      %p318 = scmp.eq.s32.totalorder %s31, 0
      %p319 = por %p317, %p318
      %p320 = scmp.ne.s32.totalorder %s309, %s312
      %p321 = scmp.eq.s32.totalorder %s36, 1
      %p322 = por %p320, %p321
      %p323 = scmp.ne.s32.totalorder %s312, %s313
      %p324 = scmp.eq.s32.totalorder %s36, 0
      %p325 = por %p323, %p324
      %p326 = scmp.ne.s32.totalorder %s312, %s313
      %p327 = scmp.eq.s32.totalorder %s37, 1
      %p328 = por %p326, %p327
      %p330 = scmp.ne.s32.totalorder %s313, %s329
      %p331 = scmp.eq.s32.totalorder %s37, 0
      %p332 = por %p330, %p331
      %s333 = ssub.s32 %s39, %s46
      %p334 = scmp.eq.s32.totalorder %s333, 0
      %s336 = sadd.s32 %s335, 1
      %s337 = scalar_select %p334, %s335, %s336
      %p340 = pneg %p334
      %p341 = scmp.eq.s32.totalorder %s31, 1
      %p342 = por %p340, %p341
      %p343 = scmp.ne.s32.totalorder %s335, %s338
      %p344 = scmp.eq.s32.totalorder %s31, 0
      %p345 = por %p343, %p344
      %p346 = scmp.ne.s32.totalorder %s335, %s338
      %p347 = scmp.eq.s32.totalorder %s36, 1
      %p348 = por %p346, %p347
      %p349 = scmp.ne.s32.totalorder %s338, %s339
      %p350 = scmp.eq.s32.totalorder %s36, 0
      %p351 = por %p349, %p350
      %p352 = scmp.ne.s32.totalorder %s338, %s339
      %p353 = scmp.eq.s32.totalorder %s37, 1
      %p354 = por %p352, %p353
      %p356 = scmp.ne.s32.totalorder %s339, %s355
      %p357 = scmp.eq.s32.totalorder %s37, 0
      %p358 = por %p356, %p357
      %s359 = ssub.s32 %s39, %s46
      %p360 = scmp.eq.s32.totalorder %s359, 0
      %s362 = sadd.s32 %s361, 1
      %s363 = scalar_select %p360, %s361, %s362
      %p366 = pneg %p360
      %p367 = scmp.eq.s32.totalorder %s31, 1
      %p368 = por %p366, %p367
      %p369 = scmp.ne.s32.totalorder %s361, %s364
      %p370 = scmp.eq.s32.totalorder %s31, 0
      %p371 = por %p369, %p370
      %p372 = scmp.ne.s32.totalorder %s361, %s364
      %p373 = scmp.eq.s32.totalorder %s36, 1
      %p374 = por %p372, %p373
      %p375 = scmp.ne.s32.totalorder %s364, %s365
      %p376 = scmp.eq.s32.totalorder %s36, 0
      %p377 = por %p375, %p376
      %p378 = scmp.ne.s32.totalorder %s364, %s365
      %p379 = scmp.eq.s32.totalorder %s37, 1
      %p380 = por %p378, %p379
      %p382 = scmp.ne.s32.totalorder %s365, %s381
      %p383 = scmp.eq.s32.totalorder %s37, 0
      %p384 = por %p382, %p383
      %s385 = ssub.s32 %s39, %s46
      %p386 = scmp.eq.s32.totalorder %s385, 0
      %s388 = sadd.s32 %s387, 1
      %s389 = scalar_select %p386, %s387, %s388
      %p392 = pneg %p386
      %p393 = scmp.eq.s32.totalorder %s31, 1
      %p394 = por %p392, %p393
      %p395 = scmp.ne.s32.totalorder %s387, %s390
      %p396 = scmp.eq.s32.totalorder %s31, 0
      %p397 = por %p395, %p396
      %p398 = scmp.ne.s32.totalorder %s387, %s390
      %p399 = scmp.eq.s32.totalorder %s36, 1
      %p400 = por %p398, %p399
      %p401 = scmp.ne.s32.totalorder %s390, %s391
      %p402 = scmp.eq.s32.totalorder %s36, 0
      %p403 = por %p401, %p402
      %p404 = scmp.ne.s32.totalorder %s390, %s391
      %p405 = scmp.eq.s32.totalorder %s37, 1
      %p406 = por %p404, %p405
      %p408 = scmp.ne.s32.totalorder %s391, %s407
      %p409 = scmp.eq.s32.totalorder %s37, 0
      %p410 = por %p408, %p409
      %s411 = ssub.s32 %s39, %s46
      %p412 = scmp.eq.s32.totalorder %s411, 0
      %s414 = sadd.s32 %s413, 1
      %s415 = scalar_select %p412, %s413, %s414
      %p418 = pneg %p412
      %p419 = scmp.eq.s32.totalorder %s31, 1
      %p420 = por %p418, %p419
      %p421 = scmp.ne.s32.totalorder %s413, %s416
      %p422 = scmp.eq.s32.totalorder %s31, 0
      %p423 = por %p421, %p422
      %p424 = scmp.ne.s32.totalorder %s413, %s416
      %p425 = scmp.eq.s32.totalorder %s36, 1
      %p426 = por %p424, %p425
      %p427 = scmp.ne.s32.totalorder %s416, %s417
      %p428 = scmp.eq.s32.totalorder %s36, 0
      %p429 = por %p427, %p428
      %p430 = scmp.ne.s32.totalorder %s416, %s417
      %p431 = scmp.eq.s32.totalorder %s37, 1
      %p432 = por %p430, %p431
      %p434 = scmp.ne.s32.totalorder %s417, %s433
      %p435 = scmp.eq.s32.totalorder %s37, 0
      %p436 = por %p434, %p435
      %s437 = ssub.s32 %s39, %s46
      %p438 = scmp.eq.s32.totalorder %s437, 0
      %s440 = sadd.s32 %s439, 1
      %s441 = scalar_select %p438, %s439, %s440
      %p444 = pneg %p438
      %p445 = scmp.eq.s32.totalorder %s31, 1
      %p446 = por %p444, %p445
      %p447 = scmp.ne.s32.totalorder %s439, %s442
      %p448 = scmp.eq.s32.totalorder %s31, 0
      %p449 = por %p447, %p448
      %p450 = scmp.ne.s32.totalorder %s439, %s442
      %p451 = scmp.eq.s32.totalorder %s36, 1
      %p452 = por %p450, %p451
      %p453 = scmp.ne.s32.totalorder %s442, %s443
      %p454 = scmp.eq.s32.totalorder %s36, 0
      %p455 = por %p453, %p454
      %p456 = scmp.ne.s32.totalorder %s442, %s443
      %p457 = scmp.eq.s32.totalorder %s37, 1
      %p458 = por %p456, %p457
      %p460 = scmp.ne.s32.totalorder %s443, %s459
      %p461 = scmp.eq.s32.totalorder %s37, 0
      %p462 = por %p460, %p461
      %s463 = ssub.s32 %s39, %s46
      %p464 = scmp.eq.s32.totalorder %s463, 0
      %s466 = sadd.s32 %s465, 1
      %s467 = scalar_select %p464, %s465, %s466
      %p470 = pneg %p464
      %p471 = scmp.eq.s32.totalorder %s31, 1
      %p472 = por %p470, %p471
      %p473 = scmp.ne.s32.totalorder %s465, %s468
      %p474 = scmp.eq.s32.totalorder %s31, 0
      %p475 = por %p473, %p474
      %p476 = scmp.ne.s32.totalorder %s465, %s468
      %p477 = scmp.eq.s32.totalorder %s36, 1
      %p478 = por %p476, %p477
      %p479 = scmp.ne.s32.totalorder %s468, %s469
      %p480 = scmp.eq.s32.totalorder %s36, 0
      %p481 = por %p479, %p480
      %p482 = scmp.ne.s32.totalorder %s468, %s469
      %p483 = scmp.eq.s32.totalorder %s37, 1
      %p484 = por %p482, %p483
      %p486 = scmp.ne.s32.totalorder %s469, %s485
      %p487 = scmp.eq.s32.totalorder %s37, 0
      %p488 = por %p486, %p487
      %s489 = ssub.s32 %s39, %s46
      %p490 = scmp.eq.s32.totalorder %s489, 0
      %s492 = sadd.s32 %s491, 1
      %s493 = scalar_select %p490, %s491, %s492
      %p496 = pneg %p490
      %p497 = scmp.eq.s32.totalorder %s31, 1
      %p498 = por %p496, %p497
      %p499 = scmp.ne.s32.totalorder %s491, %s494
      %p500 = scmp.eq.s32.totalorder %s31, 0
      %p501 = por %p499, %p500
      %p502 = scmp.ne.s32.totalorder %s491, %s494
      %p503 = scmp.eq.s32.totalorder %s36, 1
      %p504 = por %p502, %p503
      %p505 = scmp.ne.s32.totalorder %s494, %s495
      %p506 = scmp.eq.s32.totalorder %s36, 0
      %p507 = por %p505, %p506
      %p508 = scmp.ne.s32.totalorder %s494, %s495
      %p509 = scmp.eq.s32.totalorder %s37, 1
      %p510 = por %p508, %p509
      %p512 = scmp.ne.s32.totalorder %s495, %s511
      %p513 = scmp.eq.s32.totalorder %s37, 0
      %p514 = por %p512, %p513
      %s515 = ssub.s32 %s39, %s46
      %p516 = scmp.eq.s32.totalorder %s515, 0
      %s518 = sadd.s32 %s517, 1
      %s519 = scalar_select %p516, %s517, %s518
      %p522 = pneg %p516
      %p523 = scmp.eq.s32.totalorder %s31, 1
      %p524 = por %p522, %p523
      %p525 = scmp.ne.s32.totalorder %s517, %s520
      %p526 = scmp.eq.s32.totalorder %s31, 0
      %p527 = por %p525, %p526
      %p528 = scmp.ne.s32.totalorder %s517, %s520
      %p529 = scmp.eq.s32.totalorder %s36, 1
      %p530 = por %p528, %p529
      %p531 = scmp.ne.s32.totalorder %s520, %s521
      %p532 = scmp.eq.s32.totalorder %s36, 0
      %p533 = por %p531, %p532
      %p534 = scmp.ne.s32.totalorder %s520, %s521
      %p535 = scmp.eq.s32.totalorder %s37, 1
      %p536 = por %p534, %p535
      %p538 = scmp.ne.s32.totalorder %s521, %s537
      %p539 = scmp.eq.s32.totalorder %s37, 0
      %p540 = por %p538, %p539
      %s541 = ssub.s32 %s38, %s50
      %p542 = scmp.eq.s32.totalorder %s541, 0
      %s544 = sadd.s32 %s543, 1
      %s545 = scalar_select %p542, %s543, %s544
      %p548 = pneg %p542
      %p549 = scmp.eq.s32.totalorder %s31, 1
      %p550 = por %p548, %p549
      %p551 = scmp.ne.s32.totalorder %s543, %s546
      %p552 = scmp.eq.s32.totalorder %s31, 0
      %p553 = por %p551, %p552
      %p554 = scmp.ne.s32.totalorder %s543, %s546
      %p555 = scmp.eq.s32.totalorder %s36, 1
      %p556 = por %p554, %p555
      %p557 = scmp.ne.s32.totalorder %s546, %s547
      %p558 = scmp.eq.s32.totalorder %s36, 0
      %p559 = por %p557, %p558
      %p560 = scmp.ne.s32.totalorder %s546, %s547
      %p561 = scmp.eq.s32.totalorder %s37, 1
      %p562 = por %p560, %p561
      %p564 = scmp.ne.s32.totalorder %s547, %s563
      %p565 = scmp.eq.s32.totalorder %s37, 0
      %p566 = por %p564, %p565
      %p567 = scmp.le.s32.totalorder 1, %s31
      %p568 = scmp.lt.s32.totalorder %s31, 3
      %p569 = pnand %p567, %p568
      %p570 = pneg %p569
      // Predicated region
      $region9: #{tpu_custom_call.1} parent=5 // pred_check
        _
      $region10: #{tpu_custom_call.1} parent=5 // pred_check_branch
        %572 = sbr.rel (%p569) target = $region12
      $region11: #{tpu_custom_call.1} parent=5 // pred_region
        %s573 = ssub.s32 %s31, 1
        // Predicated region
        $region13: #{tpu_custom_call.1} parent=11 // pred_check
          %p574 = pneg %p69
        $region14: #{tpu_custom_call.1} parent=11 // pred_check_branch
          %576 = sbr.rel (%p574) target = $region16
        $region15: #{tpu_custom_call.1} parent=11 // pred_region
          %s577 = smul.u32 2, %s40
          %p578 = scmp.lt.s32.totalorder %s577, 1
          %s579 = scalar_select %p578, %s577, 1
          %s580 = smul.addr %s579, 8
          %s581 = scalar_lea.vmem %s0, %s580
          %s582 = smul.u32 2, %s40
        $region16: #{tpu_custom_call.1} parent=11 // pred_fallthru
          _
        // Predicated region
        $region17: #{tpu_custom_call.1} parent=11 // pred_check
          %p583 = pneg %p90
        $region18: #{tpu_custom_call.1} parent=11 // pred_check_branch
          %585 = sbr.rel (%p583) target = $region20
        $region19: #{tpu_custom_call.1} parent=11 // pred_region
          %s587 = ssub.s32 64, 64
          %588 = vsyncadd [#allocation4], %s587
          %s590 = sshll.u32 [#allocation3], 4
          %s591 = int_to_ptr.vmem [resolvable:$true] %s590
          %593 = dma.hbm_to_vmem [thread:$0]  %s1, 64, %s591, [#allocation4]
        $region20: #{tpu_custom_call.1} parent=11 // pred_fallthru
          _
        // Predicated region
        $region21: #{tpu_custom_call.1} parent=11 // pred_check
          %p594 = pneg %p111
        $region22: #{tpu_custom_call.1} parent=11 // pred_check_branch
          %596 = sbr.rel (%p594) target = $region24
        $region23: #{tpu_custom_call.1} parent=11 // pred_region
          %s598 = ssub.s32 16, 16
          %599 = vsyncadd [#allocation7], %s598
          %s601 = sshll.u32 [#allocation6], 4
          %s602 = int_to_ptr.vmem [resolvable:$true] %s601
          %604 = dma.hbm_to_vmem [thread:$0]  %s2, 16, %s602, [#allocation7]
        $region24: #{tpu_custom_call.1} parent=11 // pred_fallthru
          _
        // Predicated region
        $region25: #{tpu_custom_call.1} parent=11 // pred_check
          %p605 = pneg %p132
        $region26: #{tpu_custom_call.1} parent=11 // pred_check_branch
          %607 = sbr.rel (%p605) target = $region28
        $region27: #{tpu_custom_call.1} parent=11 // pred_region
          %s609 = ssub.s32 16, 16
          %610 = vsyncadd [#allocation7], %s609
          %s612 = sshll.u32 [#allocation8], 4
          %s613 = int_to_ptr.vmem [resolvable:$true] %s612
          %615 = dma.hbm_to_vmem [thread:$0]  %s3, 16, %s613, [#allocation7]
        $region28: #{tpu_custom_call.1} parent=11 // pred_fallthru
          _
        // Predicated region
        $region29: #{tpu_custom_call.1} parent=11 // pred_check
          %p616 = pneg %p153
        $region30: #{tpu_custom_call.1} parent=11 // pred_check_branch
          %618 = sbr.rel (%p616) target = $region32
        $region31: #{tpu_custom_call.1} parent=11 // pred_region
          %s620 = ssub.s32 16, 16
          %621 = vsyncadd [#allocation10], %s620
          %s623 = sshll.u32 [#allocation9], 4
          %s624 = int_to_ptr.vmem [resolvable:$true] %s623
          %626 = dma.hbm_to_vmem [thread:$0]  %s4, 16, %s624, [#allocation10]
        $region32: #{tpu_custom_call.1} parent=11 // pred_fallthru
          _
        // Predicated region
        $region33: #{tpu_custom_call.1} parent=11 // pred_check
          %p627 = pneg %p174
        $region34: #{tpu_custom_call.1} parent=11 // pred_check_branch
          %629 = sbr.rel (%p627) target = $region36
        $region35: #{tpu_custom_call.1} parent=11 // pred_region
          %s631 = ssub.s32 512, 512
          %632 = vsyncadd [#allocation10], %s631
          %s633 = sshll.u32 [#allocation11], 4
          %s634 = int_to_ptr.vmem [resolvable:$true] %s633
          %639 = dma.hbm_to_vmem [thread:$0]  %s5, 512, %s634, [#allocation10], 128, 128, 8
        $region36: #{tpu_custom_call.1} parent=11 // pred_fallthru
          _
        // Predicated region
        $region37: #{tpu_custom_call.1} parent=11 // pred_check
          %p640 = pneg %p195
        $region38: #{tpu_custom_call.1} parent=11 // pred_check_branch
          %642 = sbr.rel (%p640) target = $region40
        $region39: #{tpu_custom_call.1} parent=11 // pred_region
          %s644 = ssub.s32 16, 16
          %645 = vsyncadd [#allocation13], %s644
          %s647 = sshll.u32 [#allocation12], 4
          %s648 = int_to_ptr.vmem [resolvable:$true] %s647
          %650 = dma.hbm_to_vmem [thread:$0]  %s6, 16, %s648, [#allocation13]
        $region40: #{tpu_custom_call.1} parent=11 // pred_fallthru
          _
      $region12: #{tpu_custom_call.1} parent=5 // pred_fallthru
        _
      %p651 = scmp.lt.s32.totalorder %s31, 2
      // Predicated region
      $region41: #{tpu_custom_call.1} parent=5 // pred_check
        %p652 = pneg %p651
      $region42: #{tpu_custom_call.1} parent=5 // pred_check_branch
        %654 = sbr.rel (%p652) target = $region44
      $region43: #{tpu_custom_call.1} parent=5 // pred_region
        // Predicated region
        $region45: #{tpu_custom_call.1} parent=43 // pred_check
          %p655 = pneg %p215
        $region46: #{tpu_custom_call.1} parent=43 // pred_check_branch
          %657 = sbr.rel (%p655) target = $region48
        $region47: #{tpu_custom_call.1} parent=43 // pred_region
          %p658 = scmp.lt.s32.totalorder %s39, 1
          %s659 = scalar_select %p658, %s39, 1
          %s660 = smul.addr %s659, 4
          %s661 = smul.addr %s660, 8
          %s662 = scalar_lea.vmem %s7, %s661
        $region48: #{tpu_custom_call.1} parent=43 // pred_fallthru
          _
        // Predicated region
        $region49: #{tpu_custom_call.1} parent=43 // pred_check
          %p663 = pneg %p241
        $region50: #{tpu_custom_call.1} parent=43 // pred_check_branch
          %665 = sbr.rel (%p663) target = $region52
        $region51: #{tpu_custom_call.1} parent=43 // pred_region
          %s666 = sand.u32 %s31, 1
          %s667 = scalar_lea.sflag [#allocation4], %s666
          %s668 = sand.u32 %s231, 1
          %s669 = scalar_lea.vmem [#allocation14], %s668
          %s671 = ssub.s32 16, 16
          %672 = vsyncadd %s667, %s671
          %s673 = smul.addr %s39, 16
          %s674 = scalar_lea.hbm %s8, %s673
          %s676 = sshll.u32 %s669, 4
          %s677 = int_to_ptr.vmem [resolvable:$true] %s676
          %679 = dma.hbm_to_vmem [thread:$0]  %s674, 16, %s677, %s667
        $region52: #{tpu_custom_call.1} parent=43 // pred_fallthru
          _
        // Predicated region
        $region53: #{tpu_custom_call.1} parent=43 // pred_check
          %p680 = pneg %p267
        $region54: #{tpu_custom_call.1} parent=43 // pred_check_branch
          %682 = sbr.rel (%p680) target = $region56
        $region55: #{tpu_custom_call.1} parent=43 // pred_region
          %s683 = sand.u32 %s31, 1
          %s684 = scalar_lea.sflag [#allocation4], %s683
          %s685 = sand.u32 %s257, 1
          %s686 = scalar_lea.vmem [#allocation15], %s685
          %s688 = ssub.s32 16, 16
          %689 = vsyncadd %s684, %s688
          %s690 = smul.addr %s39, 16
          %s691 = scalar_lea.hbm %s9, %s690
          %s693 = sshll.u32 %s686, 4
          %s694 = int_to_ptr.vmem [resolvable:$true] %s693
          %696 = dma.hbm_to_vmem [thread:$0]  %s691, 16, %s694, %s684
        $region56: #{tpu_custom_call.1} parent=43 // pred_fallthru
          _
        // Predicated region
        $region57: #{tpu_custom_call.1} parent=43 // pred_check
          %p697 = pneg %p293
        $region58: #{tpu_custom_call.1} parent=43 // pred_check_branch
          %699 = sbr.rel (%p697) target = $region60
        $region59: #{tpu_custom_call.1} parent=43 // pred_region
          %s700 = sand.u32 %s31, 1
          %s701 = scalar_lea.sflag [#allocation4], %s700
          %s702 = sand.u32 %s283, 1
          %s703 = scalar_lea.vmem [#allocation16], %s702
          %s705 = ssub.s32 16, 16
          %706 = vsyncadd %s701, %s705
          %s707 = smul.addr %s39, 16
          %s708 = scalar_lea.hbm %s10, %s707
          %s710 = sshll.u32 %s703, 4
          %s711 = int_to_ptr.vmem [resolvable:$true] %s710
          %713 = dma.hbm_to_vmem [thread:$0]  %s708, 16, %s711, %s701
        $region60: #{tpu_custom_call.1} parent=43 // pred_fallthru
          _
        // Predicated region
        $region61: #{tpu_custom_call.1} parent=43 // pred_check
          %p714 = pneg %p319
        $region62: #{tpu_custom_call.1} parent=43 // pred_check_branch
          %716 = sbr.rel (%p714) target = $region64
        $region63: #{tpu_custom_call.1} parent=43 // pred_region
          %p717 = scmp.lt.s32.totalorder %s39, 1
          %s718 = scalar_select %p717, %s39, 1
          %s719 = smul.addr %s718, 4
          %s720 = smul.addr %s719, 8
          %s721 = scalar_lea.vmem %s11, %s720
        $region64: #{tpu_custom_call.1} parent=43 // pred_fallthru
          _
        // Predicated region
        $region65: #{tpu_custom_call.1} parent=43 // pred_check
          %p722 = pneg %p345
        $region66: #{tpu_custom_call.1} parent=43 // pred_check_branch
          %724 = sbr.rel (%p722) target = $region68
        $region67: #{tpu_custom_call.1} parent=43 // pred_region
          %s725 = sand.u32 %s31, 1
          %s726 = scalar_lea.sflag [#allocation4], %s725
          %s727 = sand.u32 %s335, 1
          %s728 = scalar_lea.vmem [#allocation17], %s727
          %s730 = ssub.s32 16, 16
          %731 = vsyncadd %s726, %s730
          %s732 = smul.addr %s39, 16
          %s733 = scalar_lea.hbm %s12, %s732
          %s735 = sshll.u32 %s728, 4
          %s736 = int_to_ptr.vmem [resolvable:$true] %s735
          %738 = dma.hbm_to_vmem [thread:$0]  %s733, 16, %s736, %s726
        $region68: #{tpu_custom_call.1} parent=43 // pred_fallthru
          _
        // Predicated region
        $region69: #{tpu_custom_call.1} parent=43 // pred_check
          %p739 = pneg %p371
        $region70: #{tpu_custom_call.1} parent=43 // pred_check_branch
          %741 = sbr.rel (%p739) target = $region72
        $region71: #{tpu_custom_call.1} parent=43 // pred_region
          %s742 = sand.u32 %s31, 1
          %s743 = scalar_lea.sflag [#allocation4], %s742
          %s744 = sand.u32 %s361, 1
          %s745 = scalar_lea.vmem [#allocation18], %s744
          %s747 = ssub.s32 16, 16
          %748 = vsyncadd %s743, %s747
          %s749 = smul.addr %s39, 16
          %s750 = scalar_lea.hbm %s13, %s749
          %s752 = sshll.u32 %s745, 4
          %s753 = int_to_ptr.vmem [resolvable:$true] %s752
          %755 = dma.hbm_to_vmem [thread:$0]  %s750, 16, %s753, %s743
        $region72: #{tpu_custom_call.1} parent=43 // pred_fallthru
          _
        // Predicated region
        $region73: #{tpu_custom_call.1} parent=43 // pred_check
          %p756 = pneg %p397
        $region74: #{tpu_custom_call.1} parent=43 // pred_check_branch
          %758 = sbr.rel (%p756) target = $region76
        $region75: #{tpu_custom_call.1} parent=43 // pred_region
          %s759 = sand.u32 %s31, 1
          %s760 = scalar_lea.sflag [#allocation4], %s759
          %s761 = sand.u32 %s387, 1
          %s762 = scalar_lea.vmem [#allocation19], %s761
          %s764 = ssub.s32 16, 16
          %765 = vsyncadd %s760, %s764
          %s766 = smul.addr %s39, 16
          %s767 = scalar_lea.hbm %s14, %s766
          %s769 = sshll.u32 %s762, 4
          %s770 = int_to_ptr.vmem [resolvable:$true] %s769
          %772 = dma.hbm_to_vmem [thread:$0]  %s767, 16, %s770, %s760
        $region76: #{tpu_custom_call.1} parent=43 // pred_fallthru
          _
        // Predicated region
        $region77: #{tpu_custom_call.1} parent=43 // pred_check
          %p773 = pneg %p423
        $region78: #{tpu_custom_call.1} parent=43 // pred_check_branch
          %775 = sbr.rel (%p773) target = $region80
        $region79: #{tpu_custom_call.1} parent=43 // pred_region
          %p776 = scmp.lt.s32.totalorder %s39, 1
          %s777 = scalar_select %p776, %s39, 1
          %s778 = smul.addr %s777, 4
          %s779 = smul.addr %s778, 8
          %s780 = scalar_lea.vmem %s15, %s779
        $region80: #{tpu_custom_call.1} parent=43 // pred_fallthru
          _
        // Predicated region
        $region81: #{tpu_custom_call.1} parent=43 // pred_check
          %p781 = pneg %p449
        $region82: #{tpu_custom_call.1} parent=43 // pred_check_branch
          %783 = sbr.rel (%p781) target = $region84
        $region83: #{tpu_custom_call.1} parent=43 // pred_region
          %p784 = scmp.lt.s32.totalorder %s39, 1
          %s785 = scalar_select %p784, %s39, 1
          %s786 = scalar_lea.vmem %s16, %s785
        $region84: #{tpu_custom_call.1} parent=43 // pred_fallthru
          _
        // Predicated region
        $region85: #{tpu_custom_call.1} parent=43 // pred_check
          %p787 = pneg %p475
        $region86: #{tpu_custom_call.1} parent=43 // pred_check_branch
          %789 = sbr.rel (%p787) target = $region88
        $region87: #{tpu_custom_call.1} parent=43 // pred_region
          %p790 = scmp.lt.s32.totalorder %s39, 1
          %s791 = scalar_select %p790, %s39, 1
          %s792 = smul.addr %s791, 8
          %s793 = scalar_lea.vmem %s17, %s792
        $region88: #{tpu_custom_call.1} parent=43 // pred_fallthru
          _
        // Predicated region
        $region89: #{tpu_custom_call.1} parent=43 // pred_check
          %p794 = pneg %p501
        $region90: #{tpu_custom_call.1} parent=43 // pred_check_branch
          %796 = sbr.rel (%p794) target = $region92
        $region91: #{tpu_custom_call.1} parent=43 // pred_region
          %p797 = scmp.lt.s32.totalorder %s39, 1
          %s798 = scalar_select %p797, %s39, 1
          %s799 = scalar_lea.vmem %s18, %s798
        $region92: #{tpu_custom_call.1} parent=43 // pred_fallthru
          _
        // Predicated region
        $region93: #{tpu_custom_call.1} parent=43 // pred_check
          %p800 = pneg %p527
        $region94: #{tpu_custom_call.1} parent=43 // pred_check_branch
          %802 = sbr.rel (%p800) target = $region96
        $region95: #{tpu_custom_call.1} parent=43 // pred_region
          %p803 = scmp.lt.s32.totalorder %s39, 1
          %s804 = scalar_select %p803, %s39, 1
          %s805 = scalar_lea.vmem %s19, %s804
        $region96: #{tpu_custom_call.1} parent=43 // pred_fallthru
          _
      $region44: #{tpu_custom_call.1} parent=5 // pred_fallthru
        _
      %p806 = scmp.le.s32.totalorder 1, %s31
      %p807 = scmp.lt.s32.totalorder %s31, 3
      %p808 = pnand %p806, %p807
      %p809 = pneg %p808
      // Predicated region
      $region97: #{tpu_custom_call.1} parent=5 // pred_check
        _
      $region98: #{tpu_custom_call.1} parent=5 // pred_check_branch
        %811 = sbr.rel (%p808) target = $region100
      $region99: #{tpu_custom_call.1} parent=5 // pred_region
        %s812 = ssub.s32 %s31, 1
        // Predicated region
        $region101: #{tpu_custom_call.1} parent=99 // pred_check
          %p813 = pneg %p90
        $region102: #{tpu_custom_call.1} parent=99 // pred_check_branch
          %815 = sbr.rel (%p813) target = $region104
        $region103: #{tpu_custom_call.1} parent=99 // pred_region
          %816 = dma.done [#allocation4], 64
        $region104: #{tpu_custom_call.1} parent=99 // pred_fallthru
          _
        // Predicated region
        $region105: #{tpu_custom_call.1} parent=99 // pred_check
          %p817 = pneg %p111
        $region106: #{tpu_custom_call.1} parent=99 // pred_check_branch
          %819 = sbr.rel (%p817) target = $region108
        $region107: #{tpu_custom_call.1} parent=99 // pred_region
          %820 = dma.done [#allocation7], 16
        $region108: #{tpu_custom_call.1} parent=99 // pred_fallthru
          _
        // Predicated region
        $region109: #{tpu_custom_call.1} parent=99 // pred_check
          %p821 = pneg %p132
        $region110: #{tpu_custom_call.1} parent=99 // pred_check_branch
          %823 = sbr.rel (%p821) target = $region112
        $region111: #{tpu_custom_call.1} parent=99 // pred_region
          %824 = dma.done [#allocation7], 16
        $region112: #{tpu_custom_call.1} parent=99 // pred_fallthru
          _
        // Predicated region
        $region113: #{tpu_custom_call.1} parent=99 // pred_check
          %p825 = pneg %p153
        $region114: #{tpu_custom_call.1} parent=99 // pred_check_branch
          %827 = sbr.rel (%p825) target = $region116
        $region115: #{tpu_custom_call.1} parent=99 // pred_region
          %828 = dma.done [#allocation10], 16
        $region116: #{tpu_custom_call.1} parent=99 // pred_fallthru
          _
        // Predicated region
        $region117: #{tpu_custom_call.1} parent=99 // pred_check
          %p829 = pneg %p174
        $region118: #{tpu_custom_call.1} parent=99 // pred_check_branch
          %831 = sbr.rel (%p829) target = $region120
        $region119: #{tpu_custom_call.1} parent=99 // pred_region
          %832 = dma.done [#allocation10], 512
        $region120: #{tpu_custom_call.1} parent=99 // pred_fallthru
          _
        // Predicated region
        $region121: #{tpu_custom_call.1} parent=99 // pred_check
          %p833 = pneg %p195
        $region122: #{tpu_custom_call.1} parent=99 // pred_check_branch
          %835 = sbr.rel (%p833) target = $region124
        $region123: #{tpu_custom_call.1} parent=99 // pred_region
          %836 = dma.done [#allocation13], 16
        $region124: #{tpu_custom_call.1} parent=99 // pred_fallthru
          _
        %s837 = sand.u32 %s36, 1
        %s838 = scalar_lea.sflag [#allocation4], %s837
        %s839 = sand.u32 %s234, 1
        %s840 = scalar_lea.vmem [#allocation14], %s839
        // Predicated region
        $region125: #{tpu_custom_call.1} parent=99 // pred_check
          %p841 = pneg %p247
        $region126: #{tpu_custom_call.1} parent=99 // pred_check_branch
          %843 = sbr.rel (%p841) target = $region128
        $region127: #{tpu_custom_call.1} parent=99 // pred_region
          %844 = dma.done %s838, 16
        $region128: #{tpu_custom_call.1} parent=99 // pred_fallthru
          _
        %s845 = sand.u32 %s36, 1
        %s846 = scalar_lea.sflag [#allocation4], %s845
        %s847 = sand.u32 %s260, 1
        %s848 = scalar_lea.vmem [#allocation15], %s847
        // Predicated region
        $region129: #{tpu_custom_call.1} parent=99 // pred_check
          %p849 = pneg %p273
        $region130: #{tpu_custom_call.1} parent=99 // pred_check_branch
          %851 = sbr.rel (%p849) target = $region132
        $region131: #{tpu_custom_call.1} parent=99 // pred_region
          %852 = dma.done %s846, 16
        $region132: #{tpu_custom_call.1} parent=99 // pred_fallthru
          _
        %s853 = sand.u32 %s36, 1
        %s854 = scalar_lea.sflag [#allocation4], %s853
        %s855 = sand.u32 %s286, 1
        %s856 = scalar_lea.vmem [#allocation16], %s855
        // Predicated region
        $region133: #{tpu_custom_call.1} parent=99 // pred_check
          %p857 = pneg %p299
        $region134: #{tpu_custom_call.1} parent=99 // pred_check_branch
          %859 = sbr.rel (%p857) target = $region136
        $region135: #{tpu_custom_call.1} parent=99 // pred_region
          %860 = dma.done %s854, 16
        $region136: #{tpu_custom_call.1} parent=99 // pred_fallthru
          _
        %s861 = sand.u32 %s36, 1
        %s862 = scalar_lea.sflag [#allocation4], %s861
        %s863 = sand.u32 %s338, 1
        %s864 = scalar_lea.vmem [#allocation17], %s863
        // Predicated region
        $region137: #{tpu_custom_call.1} parent=99 // pred_check
          %p865 = pneg %p351
        $region138: #{tpu_custom_call.1} parent=99 // pred_check_branch
          %867 = sbr.rel (%p865) target = $region140
        $region139: #{tpu_custom_call.1} parent=99 // pred_region
          %868 = dma.done %s862, 16
        $region140: #{tpu_custom_call.1} parent=99 // pred_fallthru
          _
        %s869 = sand.u32 %s36, 1
        %s870 = scalar_lea.sflag [#allocation4], %s869
        %s871 = sand.u32 %s364, 1
        %s872 = scalar_lea.vmem [#allocation18], %s871
        // Predicated region
        $region141: #{tpu_custom_call.1} parent=99 // pred_check
          %p873 = pneg %p377
        $region142: #{tpu_custom_call.1} parent=99 // pred_check_branch
          %875 = sbr.rel (%p873) target = $region144
        $region143: #{tpu_custom_call.1} parent=99 // pred_region
          %876 = dma.done %s870, 16
        $region144: #{tpu_custom_call.1} parent=99 // pred_fallthru
          _
        %s877 = sand.u32 %s36, 1
        %s878 = scalar_lea.sflag [#allocation4], %s877
        %s879 = sand.u32 %s390, 1
        %s880 = scalar_lea.vmem [#allocation19], %s879
        // Predicated region
        $region145: #{tpu_custom_call.1} parent=99 // pred_check
          %p881 = pneg %p403
        $region146: #{tpu_custom_call.1} parent=99 // pred_check_branch
          %883 = sbr.rel (%p881) target = $region148
        $region147: #{tpu_custom_call.1} parent=99 // pred_region
          %884 = dma.done %s878, 16
        $region148: #{tpu_custom_call.1} parent=99 // pred_fallthru
          _
        %s885 = smul.u32 2, %s40
        %p886 = scmp.lt.s32.totalorder %s885, 1
        %s887 = scalar_select %p886, %s885, 1
        %s888 = smul.addr %s887, 8
        %s889 = scalar_lea.vmem %s0, %s888
        %p890 = pneg %p69
        %p891 = pneg %p66
        %p892 = pneg %p90
        %p893 = pneg %p87
        %p894 = pneg %p111
        %p895 = pneg %p108
        %p896 = pneg %p132
        %p897 = pneg %p129
        %p898 = pneg %p153
        %p899 = pneg %p150
        %p900 = pneg %p174
        %p901 = pneg %p171
        %p902 = pneg %p195
        %p903 = pneg %p192
        %p904 = scmp.lt.s32.totalorder %s41, 1
        %s905 = scalar_select %p904, %s41, 1
        %s906 = smul.addr %s905, 4
        %s907 = smul.addr %s906, 8
        %s908 = scalar_lea.vmem %s7, %s907
        %p909 = pneg %p221
        %p910 = pneg %p218
        %s911 = sand.u32 %s36, 1
        %s912 = scalar_lea.sflag [#allocation4], %s911
        %s913 = sand.u32 %s234, 1
        %s914 = scalar_lea.vmem [#allocation14], %s913
        %p915 = pneg %p247
        %p916 = pneg %p244
        %s917 = sand.u32 %s36, 1
        %s918 = scalar_lea.sflag [#allocation4], %s917
        %s919 = sand.u32 %s260, 1
        %s920 = scalar_lea.vmem [#allocation15], %s919
        %p921 = pneg %p273
        %p922 = pneg %p270
        %s923 = sand.u32 %s36, 1
        %s924 = scalar_lea.sflag [#allocation4], %s923
        %s925 = sand.u32 %s286, 1
        %s926 = scalar_lea.vmem [#allocation16], %s925
        %p927 = pneg %p299
        %p928 = pneg %p296
        %p929 = scmp.lt.s32.totalorder %s41, 1
        %s930 = scalar_select %p929, %s41, 1
        %s931 = smul.addr %s930, 4
        %s932 = smul.addr %s931, 8
        %s933 = scalar_lea.vmem %s11, %s932
        %p934 = pneg %p325
        %p935 = pneg %p322
        %s936 = sand.u32 %s36, 1
        %s937 = scalar_lea.sflag [#allocation4], %s936
        %s938 = sand.u32 %s338, 1
        %s939 = scalar_lea.vmem [#allocation17], %s938
        %p940 = pneg %p351
        %p941 = pneg %p348
        %s942 = sand.u32 %s36, 1
        %s943 = scalar_lea.sflag [#allocation4], %s942
        %s944 = sand.u32 %s364, 1
        %s945 = scalar_lea.vmem [#allocation18], %s944
        %p946 = pneg %p377
        %p947 = pneg %p374
        %s948 = sand.u32 %s36, 1
        %s949 = scalar_lea.sflag [#allocation4], %s948
        %s950 = sand.u32 %s390, 1
        %s951 = scalar_lea.vmem [#allocation19], %s950
        %p952 = pneg %p403
        %p953 = pneg %p400
        %p954 = scmp.lt.s32.totalorder %s41, 1
        %s955 = scalar_select %p954, %s41, 1
        %s956 = smul.addr %s955, 4
        %s957 = smul.addr %s956, 8
        %s958 = scalar_lea.vmem %s15, %s957
        %p959 = pneg %p429
        %p960 = pneg %p426
        %p961 = scmp.lt.s32.totalorder %s41, 1
        %s962 = scalar_select %p961, %s41, 1
        %s963 = scalar_lea.vmem %s16, %s962
        %p964 = pneg %p455
        %p965 = pneg %p452
        %p966 = scmp.lt.s32.totalorder %s41, 1
        %s967 = scalar_select %p966, %s41, 1
        %s968 = smul.addr %s967, 8
        %s969 = scalar_lea.vmem %s17, %s968
        %p970 = pneg %p481
        %p971 = pneg %p478
        %p972 = scmp.lt.s32.totalorder %s41, 1
        %s973 = scalar_select %p972, %s41, 1
        %s974 = scalar_lea.vmem %s18, %s973
        %p975 = pneg %p507
        %p976 = pneg %p504
        %p977 = scmp.lt.s32.totalorder %s41, 1
        %s978 = scalar_select %p977, %s41, 1
        %s979 = scalar_lea.vmem %s19, %s978
        %p980 = pneg %p533
        %p981 = pneg %p530
        %p982 = pneg %p559
        %p983 = pneg %p556
        %s984 = smul.u32 2, %s40
        %p985 = scmp.lt.s32.totalorder %s984, 1
        %s986 = scalar_select %p985, %s984, 1
        %s987 = smul.addr %s986, 8
        %s988 = scalar_lea.vmem %s0, %s987
        %s989 = smul.u32 2, %s40
        %p990 = scmp.lt.s32.totalorder %s41, 1
        %s991 = scalar_select %p990, %s41, 1
        %s992 = smul.addr %s991, 4
        %s993 = smul.addr %s992, 8
        %s994 = scalar_lea.vmem %s7, %s993
        %p995 = scmp.lt.s32.totalorder %s41, 1
        %s996 = scalar_select %p995, %s41, 1
        %s997 = smul.addr %s996, 4
        %s998 = smul.addr %s997, 8
        %s999 = scalar_lea.vmem %s11, %s998
        %p1000 = scmp.lt.s32.totalorder %s41, 1
        %s1001 = scalar_select %p1000, %s41, 1
        %s1002 = smul.addr %s1001, 4
        %s1003 = smul.addr %s1002, 8
        %s1004 = scalar_lea.vmem %s15, %s1003
        %p1005 = scmp.lt.s32.totalorder %s41, 1
        %s1006 = scalar_select %p1005, %s41, 1
        %s1007 = scalar_lea.vmem %s16, %s1006
        %p1008 = scmp.lt.s32.totalorder %s41, 1
        %s1009 = scalar_select %p1008, %s41, 1
        %s1010 = smul.addr %s1009, 8
        %s1011 = scalar_lea.vmem %s17, %s1010
        %p1012 = scmp.lt.s32.totalorder %s41, 1
        %s1013 = scalar_select %p1012, %s41, 1
        %s1014 = scalar_lea.vmem %s18, %s1013
        %p1015 = scmp.lt.s32.totalorder %s41, 1
        %s1016 = scalar_select %p1015, %s41, 1
        %s1017 = scalar_lea.vmem %s19, %s1016
        %s1018 = smul.u32 2, %s40
        %p1019 = scmp.eq.s32.totalorder %s41, 0
        // Predicated region
        $region149: #{tpu_custom_call.1} parent=99 // pred_check
          %p1020 = pneg %p1019
        $region150: #{tpu_custom_call.1} parent=99 // pred_check_branch
          %1022 = sbr.rel (%p1020) target = $region152
        $region151: #{tpu_custom_call.1} parent=99 // pred_region
          %v1023 = vld [vmem:[%s988] sm:$0xff]
          %v1024 = vld [vmem:[%s988 + $0x8] sm:$0xff]
          %v1025 = vld [vmem:[#allocation3] sm:$0xf]
          %v1026 = vld [vmem:[#allocation6] sm:$0x1]
          %v1028 = vlaneseq
          %v1029 = vshrl.u32 %v1028, 7
          %v1030 = vsub.s32 0, %v1029
          %v1031 = vrot.slane %v1026, %v1030
          %vm1033 = vcmask 31744
          %v1035 = vsel %vm1033, %v1023, 0
          %v1038 = vsel %vm1033, %v1024, 0
          %vm1040 = vcmask 1043456
          %v1042 = vsel %vm1040, %v1025, 0
          %1044 = vmatprep.subr.mxu0 0.0
          %1045 = vmatpush1.msra.mxu0 %v1042
          %1046 = vmatprep.subr.mxu0 0.0
          %1047 = vmatpush1.msra.mxu0 0.0
          %1048 = vmatprep.subr.mxu0 0.0
          %1049 = vmatpush1.msra.mxu0 0.0
          %1050 = vmatprep.subr.mxu0 0.0
          %1051 = vmatpush1.msra.mxu0 0.0
          %1052 = vmatprep.subr.mxu0 0.0
          %1053 = vmatpush1.msra.mxu0 0.0
          %1054 = vmatprep.subr.mxu0 0.0
          %1055 = vmatpush1.msra.mxu0 0.0
          %1056 = vmatprep.subr.mxu0 0.0
          %1057 = vmatpush1.msra.mxu0 0.0
          %1058 = vmatprep.subr.mxu0 0.0
          %1059 = vmatpush1.msra.mxu0 0.0
          %1060 = vmatprep.subr.mxu0 0.0
          %1061 = vmatpush1.msra.mxu0 0.0
          %1062 = vmatprep.subr.mxu0 0.0
          %1063 = vmatpush1.msra.mxu0 0.0
          %1064 = vmatprep.subr.mxu0 0.0
          %1065 = vmatpush1.msra.mxu0 0.0
          %1066 = vmatprep.subr.mxu0 0.0
          %1067 = vmatpush1.msra.mxu0 0.0
          %1068 = vmatprep.subr.mxu0 0.0
          %1069 = vmatpush1.msra.mxu0 0.0
          %1070 = vmatprep.subr.mxu0 0.0
          %1071 = vmatpush1.msra.mxu0 0.0
          %1072 = vmatprep.subr.mxu0 0.0
          %1073 = vmatpush1.msra.mxu0 0.0
          %1074 = vmatprep.subr.mxu0 0.0
          %1075 = vmatpush1.msra.mxu0 0.0
          %1076 = vmatprep.subr.mxu0 0.0
          %1077 = vmatpush1.msra.mxu0 0.0
          %1078 = vmatprep.subr.mxu0 0.0
          %1079 = vmatpush1.msra.mxu0 0.0
          %1080 = vmatprep.subr.mxu0 0.0
          %1081 = vmatpush1.msra.mxu0 0.0
          %1082 = vmatprep.subr.mxu0 0.0
          %1083 = vmatpush1.msra.mxu0 0.0
          %1084 = vmatprep.subr.mxu0 0.0
          %1085 = vmatpush1.msra.mxu0 0.0
          %1086 = vmatprep.subr.mxu0 0.0
          %1087 = vmatpush1.msra.mxu0 0.0
          %1088 = vmatprep.subr.mxu0 0.0
          %1089 = vmatpush1.msra.mxu0 0.0
          %1090 = vmatprep.subr.mxu0 0.0
          %1091 = vmatpush1.msra.mxu0 0.0
          %1092 = vmatprep.subr.mxu0 0.0
          %1093 = vmatpush1.msra.mxu0 0.0
          %1094 = vmatprep.subr.mxu0 0.0
          %1095 = vmatpush1.msra.mxu0 0.0
          %1096 = vmatprep.subr.mxu0 0.0
          %1097 = vmatpush1.msra.mxu0 0.0
          %1098 = vmatprep.subr.mxu0 0.0
          %1099 = vmatpush1.msra.mxu0 0.0
          %1100 = vmatprep.subr.mxu0 0.0
          %1101 = vmatpush1.msra.mxu0 0.0
          %1102 = vmatprep.subr.mxu0 0.0
          %1103 = vmatpush1.msra.mxu0 0.0
          %1104 = vmatprep.subr.mxu0 0.0
          %1105 = vmatpush1.msra.mxu0 0.0
          %1106 = vmatprep.subr.mxu0 0.0
          %1107 = vmatpush1.msra.mxu0 0.0
          %1108 = vmatprep.mubr.f32.mxu0 0.0
          %1109 = vmatmul.mubr.f32.gmra.mrb[0].mxu0 %v1035
          %v1110 = vpop.f32.mrb[0].mxu0
          %v1111 = vadd.f32 %v1031, %v1110
          %v1112 = vpop.f32.mrb[0].mxu0
          %1113 = vmatprep.mubr.f32.mxu0 0.0
          %1114 = vmatmul.mubr.f32.gmra.mrb[0].mxu0 %v1038
          %v1115 = vpop.f32.mrb[0].mxu0
          %v1116 = vadd.f32 %v1031, %v1115
          %v1117 = vpop.f32.mrb[0].mxu0
          %1118 = vdwg.mxu0
          %v1119 = vld [vmem:[#allocation8] sm:$0x1]
          %v1120 = vld [vmem:[#allocation9] sm:$0x1]
          %vm1121 = vcmask 261120
          %v1122 = vsel %vm1121, %v1111, 0.0
          %1123 = vadd.xlane.f32.xlu0 %v1122
          %v1124 = vpop.xlane.xlu0 %1123
          %v1125 = vsel %vm1121, %v1116, 0.0
          %1126 = vadd.xlane.f32.xlu0 %v1125
          %v1127 = vpop.xlane.xlu0 %1126
          %v1128 = vrcp.pop 32.0
          %v1129 = vmul.f32 %v1124, %v1128
          %v1130 = vmul.f32 %v1127, %v1128
          %v1131 = vsub.f32 %v1111, %v1129
          %v1132 = vsub.f32 %v1116, %v1130
          %v1133 = vmul.f32 %v1131, %v1131
          %v1134 = vmul.f32 %v1132, %v1132
          %v1135 = vsel %vm1121, %v1133, 0.0
          %1136 = vadd.xlane.f32.xlu0 %v1135
          %v1137 = vpop.xlane.xlu0 %1136
          %v1138 = vsel %vm1121, %v1134, 0.0
          %1139 = vadd.xlane.f32.xlu0 %v1138
          %v1140 = vpop.xlane.xlu0 %1139
          %v1141 = vmul.f32 %v1137, %v1128
          %v1142 = vmul.f32 %v1140, %v1128
          %v1143 = vadd.f32 %v1141, 1e-05
          %v1144 = vadd.f32 %v1142, 1e-05
          %v1145 = vrsqrt.pop %v1143
          %v1146 = vrsqrt.pop %v1144
          %v1147 = vmul.f32 %v1131, %v1145
          %v1148 = vmul.f32 %v1132, %v1146
          %v1150 = vlaneseq
          %v1151 = vshrl.u32 %v1150, 7
          %v1152 = vsub.s32 0, %v1151
          %v1153 = vrot.slane %v1119, %v1152
          %v1155 = vmul.f32 %v1147, %v1153
          %v1156 = vmul.f32 %v1148, %v1153
          %v1158 = vlaneseq
          %v1159 = vshrl.u32 %v1158, 7
          %v1160 = vsub.s32 0, %v1159
          %v1161 = vrot.slane %v1120, %v1160
          %v1163 = vadd.f32 %v1155, %v1161
          %v1164 = vadd.f32 %v1156, %v1161
          %vm1165 = vcmp.gt.f32.partialorder %v1163, 0.0
          %vm1166 = vcmp.gt.f32.partialorder %v1164, 0.0
          %v1167 = vmul.f32 %v1163, 0.2
          %v1168 = vmul.f32 %v1164, 0.2
          %v1169 = vsel %vm1165, %v1163, %v1167
          %v1170 = vsel %vm1166, %v1164, %v1168
          %1171 = vst.msk [vmem:[#allocation2] sm:$0xff] %vm1121, %v1169
          %1172 = vst.msk [vmem:[#allocation2 + $0x8] sm:$0xff] %vm1121, %v1170
        $region152: #{tpu_custom_call.1} parent=99 // pred_fallthru
          _
        %v1173 = vld [vmem:[#allocation2] sm:$0xff]
        %v1174 = vld [vmem:[#allocation2 + $0x8] sm:$0xff]
        %v1175 = vld [vmem:[%s994] sm:$0xff]
        %v1176 = vld [vmem:[%s994 + $0x8] sm:$0xff]
        %v1177 = vld [vmem:[%s994 + $0x10] sm:$0xff]
        %v1178 = vld [vmem:[%s994 + $0x18] sm:$0xff]
        %v1179 = vld [vmem:[%s840] sm:$0x1]
        %v1181 = vlaneseq
        %v1182 = vshrl.u32 %v1181, 7
        %v1183 = vsub.s32 0, %v1182
        %v1184 = vrot.slane %v1179, %v1183
        %vm1186 = vcmask 261120
        %v1188 = vsel %vm1186, %v1173, 0
        %v1191 = vsel %vm1186, %v1174, 0
        %1193 = vmatprep.subr.mxu0 0.0
        %1194 = vmatpush1.msra.mxu0 %v1175
        %1195 = vmatprep.subr.mxu0 0.0
        %1196 = vmatpush1.msra.mxu0 %v1176
        %1197 = vmatprep.subr.mxu0 0.0
        %1198 = vmatpush1.msra.mxu0 %v1177
        %1199 = vmatprep.subr.mxu0 0.0
        %1200 = vmatpush1.msra.mxu0 %v1178
        %1201 = vmatprep.subr.mxu0 0.0
        %1202 = vmatpush1.msra.mxu0 0.0
        %1203 = vmatprep.subr.mxu0 0.0
        %1204 = vmatpush1.msra.mxu0 0.0
        %1205 = vmatprep.subr.mxu0 0.0
        %1206 = vmatpush1.msra.mxu0 0.0
        %1207 = vmatprep.subr.mxu0 0.0
        %1208 = vmatpush1.msra.mxu0 0.0
        %1209 = vmatprep.subr.mxu0 0.0
        %1210 = vmatpush1.msra.mxu0 0.0
        %1211 = vmatprep.subr.mxu0 0.0
        %1212 = vmatpush1.msra.mxu0 0.0
        %1213 = vmatprep.subr.mxu0 0.0
        %1214 = vmatpush1.msra.mxu0 0.0
        %1215 = vmatprep.subr.mxu0 0.0
        %1216 = vmatpush1.msra.mxu0 0.0
        %1217 = vmatprep.subr.mxu0 0.0
        %1218 = vmatpush1.msra.mxu0 0.0
        %1219 = vmatprep.subr.mxu0 0.0
        %1220 = vmatpush1.msra.mxu0 0.0
        %1221 = vmatprep.subr.mxu0 0.0
        %1222 = vmatpush1.msra.mxu0 0.0
        %1223 = vmatprep.subr.mxu0 0.0
        %1224 = vmatpush1.msra.mxu0 0.0
        %1225 = vmatprep.subr.mxu0 0.0
        %1226 = vmatpush1.msra.mxu0 0.0
        %1227 = vmatprep.subr.mxu0 0.0
        %1228 = vmatpush1.msra.mxu0 0.0
        %1229 = vmatprep.subr.mxu0 0.0
        %1230 = vmatpush1.msra.mxu0 0.0
        %1231 = vmatprep.subr.mxu0 0.0
        %1232 = vmatpush1.msra.mxu0 0.0
        %1233 = vmatprep.subr.mxu0 0.0
        %1234 = vmatpush1.msra.mxu0 0.0
        %1235 = vmatprep.subr.mxu0 0.0
        %1236 = vmatpush1.msra.mxu0 0.0
        %1237 = vmatprep.subr.mxu0 0.0
        %1238 = vmatpush1.msra.mxu0 0.0
        %1239 = vmatprep.subr.mxu0 0.0
        %1240 = vmatpush1.msra.mxu0 0.0
        %1241 = vmatprep.subr.mxu0 0.0
        %1242 = vmatpush1.msra.mxu0 0.0
        %1243 = vmatprep.subr.mxu0 0.0
        %1244 = vmatpush1.msra.mxu0 0.0
        %1245 = vmatprep.subr.mxu0 0.0
        %1246 = vmatpush1.msra.mxu0 0.0
        %1247 = vmatprep.subr.mxu0 0.0
        %1248 = vmatpush1.msra.mxu0 0.0
        %1249 = vmatprep.subr.mxu0 0.0
        %1250 = vmatpush1.msra.mxu0 0.0
        %1251 = vmatprep.subr.mxu0 0.0
        %1252 = vmatpush1.msra.mxu0 0.0
        %1253 = vmatprep.subr.mxu0 0.0
        %1254 = vmatpush1.msra.mxu0 0.0
        %1255 = vmatprep.subr.mxu0 0.0
        %1256 = vmatpush1.msra.mxu0 0.0
        %1257 = vmatprep.mubr.f32.mxu0 0.0
        %1258 = vmatmul.mubr.f32.gmra.mrb[0].mxu0 %v1188
        %v1259 = vpop.f32.mrb[0].mxu0
        %v1260 = vadd.f32 %v1184, %v1259
        %v1261 = vpop.f32.mrb[0].mxu0
        %1262 = vmatprep.mubr.f32.mxu0 0.0
        %1263 = vmatmul.mubr.f32.gmra.mrb[0].mxu0 %v1191
        %v1264 = vpop.f32.mrb[0].mxu0
        %v1265 = vadd.f32 %v1184, %v1264
        %v1266 = vpop.f32.mrb[0].mxu0
        %1267 = vdwg.mxu0
        %v1268 = vld [vmem:[%s848] sm:$0x1]
        %v1269 = vld [vmem:[%s856] sm:$0x1]
        %v1270 = vsel %vm1186, %v1260, 0.0
        %1271 = vadd.xlane.f32.xlu0 %v1270
        %v1272 = vpop.xlane.xlu0 %1271
        %v1273 = vsel %vm1186, %v1265, 0.0
        %1274 = vadd.xlane.f32.xlu0 %v1273
        %v1275 = vpop.xlane.xlu0 %1274
        %v1276 = vrcp.pop 32.0
        %v1277 = vmul.f32 %v1272, %v1276
        %v1278 = vmul.f32 %v1275, %v1276
        %v1279 = vsub.f32 %v1260, %v1277
        %v1280 = vsub.f32 %v1265, %v1278
        %v1281 = vmul.f32 %v1279, %v1279
        %v1282 = vmul.f32 %v1280, %v1280
        %v1283 = vsel %vm1186, %v1281, 0.0
        %1284 = vadd.xlane.f32.xlu0 %v1283
        %v1285 = vpop.xlane.xlu0 %1284
        %v1286 = vsel %vm1186, %v1282, 0.0
        %1287 = vadd.xlane.f32.xlu0 %v1286
        %v1288 = vpop.xlane.xlu0 %1287
        %v1289 = vmul.f32 %v1285, %v1276
        %v1290 = vmul.f32 %v1288, %v1276
        %v1291 = vadd.f32 %v1289, 1e-05
        %v1292 = vadd.f32 %v1290, 1e-05
        %v1293 = vrsqrt.pop %v1291
        %v1294 = vrsqrt.pop %v1292
        %v1295 = vmul.f32 %v1279, %v1293
        %v1296 = vmul.f32 %v1280, %v1294
        %v1298 = vlaneseq
        %v1299 = vshrl.u32 %v1298, 7
        %v1300 = vsub.s32 0, %v1299
        %v1301 = vrot.slane %v1268, %v1300
        %v1303 = vmul.f32 %v1295, %v1301
        %v1304 = vmul.f32 %v1296, %v1301
        %v1306 = vlaneseq
        %v1307 = vshrl.u32 %v1306, 7
        %v1308 = vsub.s32 0, %v1307
        %v1309 = vrot.slane %v1269, %v1308
        %v1311 = vadd.f32 %v1303, %v1309
        %v1312 = vadd.f32 %v1304, %v1309
        %vm1313 = vcmp.gt.f32.partialorder %v1311, 0.0
        %vm1314 = vcmp.gt.f32.partialorder %v1312, 0.0
        %v1315 = vmul.f32 %v1311, 0.2
        %v1316 = vmul.f32 %v1312, 0.2
        %v1317 = vsel %vm1313, %v1311, %v1315
        %v1318 = vsel %vm1314, %v1312, %v1316
        %v1319 = vld [vmem:[%s999] sm:$0xff]
        %v1320 = vld [vmem:[%s999 + $0x8] sm:$0xff]
        %v1321 = vld [vmem:[%s999 + $0x10] sm:$0xff]
        %v1322 = vld [vmem:[%s999 + $0x18] sm:$0xff]
        %v1323 = vld [vmem:[%s864] sm:$0x1]
        %v1325 = vlaneseq
        %v1326 = vshrl.u32 %v1325, 7
        %v1327 = vsub.s32 0, %v1326
        %v1328 = vrot.slane %v1323, %v1327
        %v1331 = vsel %vm1186, %v1317, 0
        %v1334 = vsel %vm1186, %v1318, 0
        %1336 = vmatprep.subr.mxu0 0.0
        %1337 = vmatpush1.msra.mxu0 %v1319
        %1338 = vmatprep.subr.mxu0 0.0
        %1339 = vmatpush1.msra.mxu0 %v1320
        %1340 = vmatprep.subr.mxu0 0.0
        %1341 = vmatpush1.msra.mxu0 %v1321
        %1342 = vmatprep.subr.mxu0 0.0
        %1343 = vmatpush1.msra.mxu0 %v1322
        %1344 = vmatprep.subr.mxu0 0.0
        %1345 = vmatpush1.msra.mxu0 0.0
        %1346 = vmatprep.subr.mxu0 0.0
        %1347 = vmatpush1.msra.mxu0 0.0
        %1348 = vmatprep.subr.mxu0 0.0
        %1349 = vmatpush1.msra.mxu0 0.0
        %1350 = vmatprep.subr.mxu0 0.0
        %1351 = vmatpush1.msra.mxu0 0.0
        %1352 = vmatprep.subr.mxu0 0.0
        %1353 = vmatpush1.msra.mxu0 0.0
        %1354 = vmatprep.subr.mxu0 0.0
        %1355 = vmatpush1.msra.mxu0 0.0
        %1356 = vmatprep.subr.mxu0 0.0
        %1357 = vmatpush1.msra.mxu0 0.0
        %1358 = vmatprep.subr.mxu0 0.0
        %1359 = vmatpush1.msra.mxu0 0.0
        %1360 = vmatprep.subr.mxu0 0.0
        %1361 = vmatpush1.msra.mxu0 0.0
        %1362 = vmatprep.subr.mxu0 0.0
        %1363 = vmatpush1.msra.mxu0 0.0
        %1364 = vmatprep.subr.mxu0 0.0
        %1365 = vmatpush1.msra.mxu0 0.0
        %1366 = vmatprep.subr.mxu0 0.0
        %1367 = vmatpush1.msra.mxu0 0.0
        %1368 = vmatprep.subr.mxu0 0.0
        %1369 = vmatpush1.msra.mxu0 0.0
        %1370 = vmatprep.subr.mxu0 0.0
        %1371 = vmatpush1.msra.mxu0 0.0
        %1372 = vmatprep.subr.mxu0 0.0
        %1373 = vmatpush1.msra.mxu0 0.0
        %1374 = vmatprep.subr.mxu0 0.0
        %1375 = vmatpush1.msra.mxu0 0.0
        %1376 = vmatprep.subr.mxu0 0.0
        %1377 = vmatpush1.msra.mxu0 0.0
        %1378 = vmatprep.subr.mxu0 0.0
        %1379 = vmatpush1.msra.mxu0 0.0
        %1380 = vmatprep.subr.mxu0 0.0
        %1381 = vmatpush1.msra.mxu0 0.0
        %1382 = vmatprep.subr.mxu0 0.0
        %1383 = vmatpush1.msra.mxu0 0.0
        %1384 = vmatprep.subr.mxu0 0.0
        %1385 = vmatpush1.msra.mxu0 0.0
        %1386 = vmatprep.subr.mxu0 0.0
        %1387 = vmatpush1.msra.mxu0 0.0
        %1388 = vmatprep.subr.mxu0 0.0
        %1389 = vmatpush1.msra.mxu0 0.0
        %1390 = vmatprep.subr.mxu0 0.0
        %1391 = vmatpush1.msra.mxu0 0.0
        %1392 = vmatprep.subr.mxu0 0.0
        %1393 = vmatpush1.msra.mxu0 0.0
        %1394 = vmatprep.subr.mxu0 0.0
        %1395 = vmatpush1.msra.mxu0 0.0
        %1396 = vmatprep.subr.mxu0 0.0
        %1397 = vmatpush1.msra.mxu0 0.0
        %1398 = vmatprep.subr.mxu0 0.0
        %1399 = vmatpush1.msra.mxu0 0.0
        %1400 = vmatprep.mubr.f32.mxu0 0.0
        %1401 = vmatmul.mubr.f32.gmra.mrb[0].mxu0 %v1331
        %v1402 = vpop.f32.mrb[0].mxu0
        %v1403 = vadd.f32 %v1328, %v1402
        %v1404 = vpop.f32.mrb[0].mxu0
        %1405 = vmatprep.mubr.f32.mxu0 0.0
        %1406 = vmatmul.mubr.f32.gmra.mrb[0].mxu0 %v1334
        %v1407 = vpop.f32.mrb[0].mxu0
        %v1408 = vadd.f32 %v1328, %v1407
        %v1409 = vpop.f32.mrb[0].mxu0
        %1410 = vdwg.mxu0
        %v1411 = vld [vmem:[%s872] sm:$0x1]
        %v1412 = vld [vmem:[%s880] sm:$0x1]
        %v1413 = vsel %vm1186, %v1403, 0.0
        %1414 = vadd.xlane.f32.xlu0 %v1413
        %v1415 = vpop.xlane.xlu0 %1414
        %v1416 = vsel %vm1186, %v1408, 0.0
        %1417 = vadd.xlane.f32.xlu0 %v1416
        %v1418 = vpop.xlane.xlu0 %1417
        %v1419 = vmul.f32 %v1415, %v1276
        %v1420 = vmul.f32 %v1418, %v1276
        %v1421 = vsub.f32 %v1403, %v1419
        %v1422 = vsub.f32 %v1408, %v1420
        %v1423 = vmul.f32 %v1421, %v1421
        %v1424 = vmul.f32 %v1422, %v1422
        %v1425 = vsel %vm1186, %v1423, 0.0
        %1426 = vadd.xlane.f32.xlu0 %v1425
        %v1427 = vpop.xlane.xlu0 %1426
        %v1428 = vsel %vm1186, %v1424, 0.0
        %1429 = vadd.xlane.f32.xlu0 %v1428
        %v1430 = vpop.xlane.xlu0 %1429
        %v1431 = vmul.f32 %v1427, %v1276
        %v1432 = vmul.f32 %v1430, %v1276
        %v1433 = vadd.f32 %v1431, 1e-05
        %v1434 = vadd.f32 %v1432, 1e-05
        %v1435 = vrsqrt.pop %v1433
        %v1436 = vrsqrt.pop %v1434
        %v1437 = vmul.f32 %v1421, %v1435
        %v1438 = vmul.f32 %v1422, %v1436
        %v1440 = vlaneseq
        %v1441 = vshrl.u32 %v1440, 7
        %v1442 = vsub.s32 0, %v1441
        %v1443 = vrot.slane %v1411, %v1442
        %v1445 = vmul.f32 %v1437, %v1443
        %v1446 = vmul.f32 %v1438, %v1443
        %v1448 = vlaneseq
        %v1449 = vshrl.u32 %v1448, 7
        %v1450 = vsub.s32 0, %v1449
        %v1451 = vrot.slane %v1412, %v1450
        %v1453 = vadd.f32 %v1445, %v1451
        %v1454 = vadd.f32 %v1446, %v1451
        %v1455 = vsel %vm1186, %v1453, 0.0
        %v1456 = vrot.slane %v1455, 4
        %v1457 = vadd.f32 %v1455, %v1456
        %v1458 = vrot.slane %v1457, 2
        %v1459 = vadd.f32 %v1457, %v1458
        %v1460 = vrot.slane %v1459, 1
        %v1461 = vadd.f32 %v1459, %v1460
        %v1462 = vsel %vm1186, %v1454, 0.0
        %v1463 = vrot.slane %v1462, 4
        %v1464 = vadd.f32 %v1462, %v1463
        %v1465 = vrot.slane %v1464, 2
        %v1466 = vadd.f32 %v1464, %v1465
        %v1467 = vrot.slane %v1466, 1
        %v1468 = vadd.f32 %v1466, %v1467
        %v1469 = vrcp.pop 8.0
        %v1470 = vmul.f32 %v1461, %v1469
        %v1471 = vmul.f32 %v1468, %v1469
        %v1472 = vld [vmem:[%s1004] sm:$0xff]
        %v1473 = vld [vmem:[%s1004 + $0x8] sm:$0xff]
        %v1474 = vld [vmem:[%s1004 + $0x10] sm:$0xff]
        %v1475 = vld [vmem:[%s1004 + $0x18] sm:$0xff]
        %v1476 = vld [vmem:[%s1007] sm:$0x1]
        %v1478 = vlaneseq
        %v1479 = vshrl.u32 %v1478, 7
        %v1480 = vsub.s32 0, %v1479
        %v1481 = vrot.slane %v1476, %v1480
        %vm1485 = vcmask 1041409
        %v1486 = vsel %vm1485, %v1471, %v1470
        %v1487 = vsel %vm1186, %v1486, 0
        %1489 = vmatprep.subr.mxu0 0.0
        %1490 = vmatpush1.msra.mxu0 %v1472
        %1491 = vmatprep.subr.mxu0 0.0
        %1492 = vmatpush1.msra.mxu0 %v1473
        %1493 = vmatprep.subr.mxu0 0.0
        %1494 = vmatpush1.msra.mxu0 %v1474
        %1495 = vmatprep.subr.mxu0 0.0
        %1496 = vmatpush1.msra.mxu0 %v1475
        %1497 = vmatprep.subr.mxu0 0.0
        %1498 = vmatpush1.msra.mxu0 0.0
        %1499 = vmatprep.subr.mxu0 0.0
        %1500 = vmatpush1.msra.mxu0 0.0
        %1501 = vmatprep.subr.mxu0 0.0
        %1502 = vmatpush1.msra.mxu0 0.0
        %1503 = vmatprep.subr.mxu0 0.0
        %1504 = vmatpush1.msra.mxu0 0.0
        %1505 = vmatprep.subr.mxu0 0.0
        %1506 = vmatpush1.msra.mxu0 0.0
        %1507 = vmatprep.subr.mxu0 0.0
        %1508 = vmatpush1.msra.mxu0 0.0
        %1509 = vmatprep.subr.mxu0 0.0
        %1510 = vmatpush1.msra.mxu0 0.0
        %1511 = vmatprep.subr.mxu0 0.0
        %1512 = vmatpush1.msra.mxu0 0.0
        %1513 = vmatprep.subr.mxu0 0.0
        %1514 = vmatpush1.msra.mxu0 0.0
        %1515 = vmatprep.subr.mxu0 0.0
        %1516 = vmatpush1.msra.mxu0 0.0
        %1517 = vmatprep.subr.mxu0 0.0
        %1518 = vmatpush1.msra.mxu0 0.0
        %1519 = vmatprep.subr.mxu0 0.0
        %1520 = vmatpush1.msra.mxu0 0.0
        %1521 = vmatprep.subr.mxu0 0.0
        %1522 = vmatpush1.msra.mxu0 0.0
        %1523 = vmatprep.subr.mxu0 0.0
        %1524 = vmatpush1.msra.mxu0 0.0
        %1525 = vmatprep.subr.mxu0 0.0
        %1526 = vmatpush1.msra.mxu0 0.0
        %1527 = vmatprep.subr.mxu0 0.0
        %1528 = vmatpush1.msra.mxu0 0.0
        %1529 = vmatprep.subr.mxu0 0.0
        %1530 = vmatpush1.msra.mxu0 0.0
        %1531 = vmatprep.subr.mxu0 0.0
        %1532 = vmatpush1.msra.mxu0 0.0
        %1533 = vmatprep.subr.mxu0 0.0
        %1534 = vmatpush1.msra.mxu0 0.0
        %1535 = vmatprep.subr.mxu0 0.0
        %1536 = vmatpush1.msra.mxu0 0.0
        %1537 = vmatprep.subr.mxu0 0.0
        %1538 = vmatpush1.msra.mxu0 0.0
        %1539 = vmatprep.subr.mxu0 0.0
        %1540 = vmatpush1.msra.mxu0 0.0
        %1541 = vmatprep.subr.mxu0 0.0
        %1542 = vmatpush1.msra.mxu0 0.0
        %1543 = vmatprep.subr.mxu0 0.0
        %1544 = vmatpush1.msra.mxu0 0.0
        %1545 = vmatprep.subr.mxu0 0.0
        %1546 = vmatpush1.msra.mxu0 0.0
        %1547 = vmatprep.subr.mxu0 0.0
        %1548 = vmatpush1.msra.mxu0 0.0
        %1549 = vmatprep.subr.mxu0 0.0
        %1550 = vmatpush1.msra.mxu0 0.0
        %1551 = vmatprep.subr.mxu0 0.0
        %1552 = vmatpush1.msra.mxu0 0.0
        %1553 = vmatprep.mubr.f32.mxu0 0.0
        %1554 = vmatmul.mubr.f32.gmra.mrb[0].mxu0 %v1487
        %v1555 = vpop.f32.mrb[0].mxu0
        %v1556 = vadd.f32 %v1481, %v1555
        %v1557 = vpop.f32.mrb[0].mxu0
        %1558 = vdwg.mxu0
        %v1559 = vmax.f32 %v1556, 0.0
        %v1560 = vld [vmem:[%s1011] sm:$0xff]
        %v1561 = vld [vmem:[%s1014] sm:$0x1]
        %v1563 = vlaneseq
        %v1564 = vshrl.u32 %v1563, 7
        %v1565 = vsub.s32 0, %v1564
        %v1566 = vrot.slane %v1561, %v1565
        %vm1568 = vcmask 64512
        %v1570 = vsel %vm1568, %v1559, 0
        %1572 = vmatprep.subr.mxu0 0.0
        %1573 = vmatpush1.msra.mxu0 %v1560
        %1574 = vmatprep.subr.mxu0 0.0
        %1575 = vmatpush1.msra.mxu0 0.0
        %1576 = vmatprep.subr.mxu0 0.0
        %1577 = vmatpush1.msra.mxu0 0.0
        %1578 = vmatprep.subr.mxu0 0.0
        %1579 = vmatpush1.msra.mxu0 0.0
        %1580 = vmatprep.subr.mxu0 0.0
        %1581 = vmatpush1.msra.mxu0 0.0
        %1582 = vmatprep.subr.mxu0 0.0
        %1583 = vmatpush1.msra.mxu0 0.0
        %1584 = vmatprep.subr.mxu0 0.0
        %1585 = vmatpush1.msra.mxu0 0.0
        %1586 = vmatprep.subr.mxu0 0.0
        %1587 = vmatpush1.msra.mxu0 0.0
        %1588 = vmatprep.subr.mxu0 0.0
        %1589 = vmatpush1.msra.mxu0 0.0
        %1590 = vmatprep.subr.mxu0 0.0
        %1591 = vmatpush1.msra.mxu0 0.0
        %1592 = vmatprep.subr.mxu0 0.0
        %1593 = vmatpush1.msra.mxu0 0.0
        %1594 = vmatprep.subr.mxu0 0.0
        %1595 = vmatpush1.msra.mxu0 0.0
        %1596 = vmatprep.subr.mxu0 0.0
        %1597 = vmatpush1.msra.mxu0 0.0
        %1598 = vmatprep.subr.mxu0 0.0
        %1599 = vmatpush1.msra.mxu0 0.0
        %1600 = vmatprep.subr.mxu0 0.0
        %1601 = vmatpush1.msra.mxu0 0.0
        %1602 = vmatprep.subr.mxu0 0.0
        %1603 = vmatpush1.msra.mxu0 0.0
        %1604 = vmatprep.subr.mxu0 0.0
        %1605 = vmatpush1.msra.mxu0 0.0
        %1606 = vmatprep.subr.mxu0 0.0
        %1607 = vmatpush1.msra.mxu0 0.0
        %1608 = vmatprep.subr.mxu0 0.0
        %1609 = vmatpush1.msra.mxu0 0.0
        %1610 = vmatprep.subr.mxu0 0.0
        %1611 = vmatpush1.msra.mxu0 0.0
        %1612 = vmatprep.subr.mxu0 0.0
        %1613 = vmatpush1.msra.mxu0 0.0
        %1614 = vmatprep.subr.mxu0 0.0
        %1615 = vmatpush1.msra.mxu0 0.0
        %1616 = vmatprep.subr.mxu0 0.0
        %1617 = vmatpush1.msra.mxu0 0.0
        %1618 = vmatprep.subr.mxu0 0.0
        %1619 = vmatpush1.msra.mxu0 0.0
        %1620 = vmatprep.subr.mxu0 0.0
        %1621 = vmatpush1.msra.mxu0 0.0
        %1622 = vmatprep.subr.mxu0 0.0
        %1623 = vmatpush1.msra.mxu0 0.0
        %1624 = vmatprep.subr.mxu0 0.0
        %1625 = vmatpush1.msra.mxu0 0.0
        %1626 = vmatprep.subr.mxu0 0.0
        %1627 = vmatpush1.msra.mxu0 0.0
        %1628 = vmatprep.subr.mxu0 0.0
        %1629 = vmatpush1.msra.mxu0 0.0
        %1630 = vmatprep.subr.mxu0 0.0
        %1631 = vmatpush1.msra.mxu0 0.0
        %1632 = vmatprep.subr.mxu0 0.0
        %1633 = vmatpush1.msra.mxu0 0.0
        %1634 = vmatprep.subr.mxu0 0.0
        %1635 = vmatpush1.msra.mxu0 0.0
        %1636 = vmatprep.mubr.f32.mxu0 0.0
        %1637 = vmatmul.mubr.f32.gmra.mrb[0].mxu0 %v1570
        %v1638 = vpop.f32.mrb[0].mxu0
        %v1639 = vadd.f32 %v1566, %v1638
        %v1640 = vpop.f32.mrb[0].mxu0
        %1641 = vdwg.mxu0
        %v1642 = vxor.u32 %v1639, 2147483648
        %v1643 = vmul.f32 %v1642, 1.442695
        %v1644 = vpow.pop %v1643
        %v1645 = vadd.f32 %v1644, 1.0
        %v1646 = vrcp.pop %v1645
        %v1647 = vmul.f32 1.0, %v1646
        %v1650 = vunpack.c.l.s4 1966171168
        %v1651 = vunpack.c.0.s8 %v1650
        %v1652 = vlaneseq
        %v1653 = vshrl.u32 %v1652, 7
        %v1654 = vsub.s32 %v1651, %v1653
        %v1655 = vrot.slane %v1647, %v1654
        %v1656 = vcombine.high %v1655, %v1655
        %v1658 = vunpack.c.l.s4 1966171168
        %v1659 = vunpack.c.0.s8 %v1658
        %v1660 = vlaneseq
        %v1661 = vshrl.u32 %v1660, 7
        %v1662 = vsub.s32 %v1659, %v1661
        %v1663 = vrot.slane %v1655, %v1662
        %v1665 = vunpack.c.l.s4 1966171168
        %v1666 = vunpack.c.0.s8 %v1665
        %v1667 = vlaneseq
        %v1668 = vshrl.u32 %v1667, 7
        %v1669 = vsub.s32 %v1666, %v1668
        %v1670 = vrot.slane %v1656, %v1669
        %v1671 = vlaneseq
        %v1672 = vshrl.u32 %v1671, 7
        %v1673 = vsub.s32 0, %v1672
        %v1674 = vrot.slane %v1663, %v1673
        %v1675 = vlaneseq
        %v1676 = vshrl.u32 %v1675, 7
        %v1677 = vsub.s32 0, %v1676
        %v1678 = vrot.slane %v1670, %v1677
        %v1681 = vmul.f32 %v1453, %v1674
        %v1682 = vmul.f32 %v1454, %v1678
        %v1683 = vld [vmem:[%s1017] sm:$0x1]
        %v1685 = vlaneseq
        %v1686 = vshrl.u32 %v1685, 7
        %v1687 = vsub.s32 0, %v1686
        %v1688 = vrot.slane %v1683, %v1687
        %1689 = vset.pattern.permute.xlu0 0
        %1690 = vperm.xlu0 %1689, %v1688
        %v1691 = vpop.permute.xlu0 %1690
        %v1693 = vmul.f32 %v1681, %v1691
        %v1694 = vmul.f32 %v1682, %v1691
        %v1695 = vadd.f32 %v1693, %v1173
        %v1696 = vadd.f32 %v1694, %v1174
        %vm1697 = vcmp.gt.f32.partialorder %v1695, 0.0
        %vm1698 = vcmp.gt.f32.partialorder %v1696, 0.0
        %v1699 = vmul.f32 %v1695, 0.2
        %v1700 = vmul.f32 %v1696, 0.2
        %v1701 = vsel %vm1697, %v1695, %v1699
        %v1702 = vsel %vm1698, %v1696, %v1700
        %1703 = vst.msk [vmem:[#allocation2] sm:$0xff] %vm1186, %v1701
        %1704 = vst.msk [vmem:[#allocation2 + $0x8] sm:$0xff] %vm1186, %v1702
        %p1705 = scmp.eq.s32.totalorder %s41, 1
        // Predicated region
        $region153: #{tpu_custom_call.1} parent=99 // pred_check
          %p1706 = pneg %p1705
        $region154: #{tpu_custom_call.1} parent=99 // pred_check_branch
          %1708 = sbr.rel (%p1706) target = $region156
        $region155: #{tpu_custom_call.1} parent=99 // pred_region
          %v1709 = vld [vmem:[#allocation2] sm:$0xff]
          %v1710 = vld [vmem:[#allocation2 + $0x8] sm:$0xff]
          %v1711 = vld [vmem:[#allocation11] sm:$0xff]
          %v1712 = vld [vmem:[#allocation11 + $0x8] sm:$0xff]
          %v1713 = vld [vmem:[#allocation11 + $0x10] sm:$0xff]
          %v1714 = vld [vmem:[#allocation11 + $0x18] sm:$0xff]
          %v1715 = vld [vmem:[#allocation12] sm:$0x1]
          %v1717 = vlaneseq
          %v1718 = vshrl.u32 %v1717, 7
          %v1719 = vsub.s32 0, %v1718
          %v1720 = vrot.slane %v1715, %v1719
          %v1723 = vsel %vm1186, %v1709, 0
          %v1726 = vsel %vm1186, %v1710, 0
          %1728 = vmatprep.subr.mxu0 0.0
          %1729 = vmatpush1.msra.mxu0 %v1711
          %1730 = vmatprep.subr.mxu0 0.0
          %1731 = vmatpush1.msra.mxu0 %v1712
          %1732 = vmatprep.subr.mxu0 0.0
          %1733 = vmatpush1.msra.mxu0 %v1713
          %1734 = vmatprep.subr.mxu0 0.0
          %1735 = vmatpush1.msra.mxu0 %v1714
          %1736 = vmatprep.subr.mxu0 0.0
          %1737 = vmatpush1.msra.mxu0 0.0
          %1738 = vmatprep.subr.mxu0 0.0
          %1739 = vmatpush1.msra.mxu0 0.0
          %1740 = vmatprep.subr.mxu0 0.0
          %1741 = vmatpush1.msra.mxu0 0.0
          %1742 = vmatprep.subr.mxu0 0.0
          %1743 = vmatpush1.msra.mxu0 0.0
          %1744 = vmatprep.subr.mxu0 0.0
          %1745 = vmatpush1.msra.mxu0 0.0
          %1746 = vmatprep.subr.mxu0 0.0
          %1747 = vmatpush1.msra.mxu0 0.0
          %1748 = vmatprep.subr.mxu0 0.0
          %1749 = vmatpush1.msra.mxu0 0.0
          %1750 = vmatprep.subr.mxu0 0.0
          %1751 = vmatpush1.msra.mxu0 0.0
          %1752 = vmatprep.subr.mxu0 0.0
          %1753 = vmatpush1.msra.mxu0 0.0
          %1754 = vmatprep.subr.mxu0 0.0
          %1755 = vmatpush1.msra.mxu0 0.0
          %1756 = vmatprep.subr.mxu0 0.0
          %1757 = vmatpush1.msra.mxu0 0.0
          %1758 = vmatprep.subr.mxu0 0.0
          %1759 = vmatpush1.msra.mxu0 0.0
          %1760 = vmatprep.subr.mxu0 0.0
          %1761 = vmatpush1.msra.mxu0 0.0
          %1762 = vmatprep.subr.mxu0 0.0
          %1763 = vmatpush1.msra.mxu0 0.0
          %1764 = vmatprep.subr.mxu0 0.0
          %1765 = vmatpush1.msra.mxu0 0.0
          %1766 = vmatprep.subr.mxu0 0.0
          %1767 = vmatpush1.msra.mxu0 0.0
          %1768 = vmatprep.subr.mxu0 0.0
          %1769 = vmatpush1.msra.mxu0 0.0
          %1770 = vmatprep.subr.mxu0 0.0
          %1771 = vmatpush1.msra.mxu0 0.0
          %1772 = vmatprep.subr.mxu0 0.0
          %1773 = vmatpush1.msra.mxu0 0.0
          %1774 = vmatprep.subr.mxu0 0.0
          %1775 = vmatpush1.msra.mxu0 0.0
          %1776 = vmatprep.subr.mxu0 0.0
          %1777 = vmatpush1.msra.mxu0 0.0
          %1778 = vmatprep.subr.mxu0 0.0
          %1779 = vmatpush1.msra.mxu0 0.0
          %1780 = vmatprep.subr.mxu0 0.0
          %1781 = vmatpush1.msra.mxu0 0.0
          %1782 = vmatprep.subr.mxu0 0.0
          %1783 = vmatpush1.msra.mxu0 0.0
          %1784 = vmatprep.subr.mxu0 0.0
          %1785 = vmatpush1.msra.mxu0 0.0
          %1786 = vmatprep.subr.mxu0 0.0
          %1787 = vmatpush1.msra.mxu0 0.0
          %1788 = vmatprep.subr.mxu0 0.0
          %1789 = vmatpush1.msra.mxu0 0.0
          %1790 = vmatprep.subr.mxu0 0.0
          %1791 = vmatpush1.msra.mxu0 0.0
          %1792 = vmatprep.mubr.f32.mxu0 0.0
          %1793 = vmatmul.mubr.f32.gmra.mrb[0].mxu0 %v1723
          %v1794 = vpop.f32.mrb[0].mxu0
          %v1795 = vadd.f32 %v1720, %v1794
          %v1796 = vpop.f32.mrb[0].mxu0
          %1797 = vmatprep.mubr.f32.mxu0 0.0
          %1798 = vmatmul.mubr.f32.gmra.mrb[0].mxu0 %v1726
          %v1799 = vpop.f32.mrb[0].mxu0
          %v1800 = vadd.f32 %v1720, %v1799
          %v1801 = vpop.f32.mrb[0].mxu0
          %1802 = vdwg.mxu0
          %1803 = vst [vmem:[#allocation20] sm:$0xff] %v1795
          %1804 = vst [vmem:[#allocation20 + $0x8] sm:$0xff] %v1800
        $region156: #{tpu_custom_call.1} parent=99 // pred_fallthru
          _
        // Predicated region
        $region157: #{tpu_custom_call.1} parent=99 // pred_check
          %p1805 = pneg %p556
        $region158: #{tpu_custom_call.1} parent=99 // pred_check_branch
          %1807 = sbr.rel (%p1805) target = $region160
        $region159: #{tpu_custom_call.1} parent=99 // pred_region
          %s1808 = smul.u32 2, %s40
          %s1810 = ssub.s32 256, 256
          %1811 = vsyncadd [#allocation5], %s1810
          %s1812 = smul.addr %s1808, 128
          %s1813 = scalar_lea.hbm %s20, %s1812
          %s1814 = sshll.u32 [#allocation20], 4
          %s1815 = int_to_ptr.vmem [resolvable:$true] %s1814
          %1820 = dma.vmem_to_hbm [thread:$0]  %s1815, 256, %s1813, [#allocation5], 128, 128, 8
        $region160: #{tpu_custom_call.1} parent=99 // pred_fallthru
          _
        // Predicated region
        $region161: #{tpu_custom_call.1} parent=99 // pred_check
          %p1821 = pneg %p556
        $region162: #{tpu_custom_call.1} parent=99 // pred_check_branch
          %1823 = sbr.rel (%p1821) target = $region164
        $region163: #{tpu_custom_call.1} parent=99 // pred_region
          %1824 = dma.done [#allocation5], 256
        $region164: #{tpu_custom_call.1} parent=99 // pred_fallthru
          _
      $region100: #{tpu_custom_call.1} parent=5 // pred_fallthru
        _
      %p1825 = scmp.le.s32.totalorder 2, %s31
      // Predicated region
      $region165: #{tpu_custom_call.1} parent=5 // pred_check
        %p1826 = pneg %p1825
      $region166: #{tpu_custom_call.1} parent=5 // pred_check_branch
        %1828 = sbr.rel (%p1826) target = $region168
      $region167: #{tpu_custom_call.1} parent=5 // pred_region
        %s1829 = ssub.s32 %s31, 2
      $region168: #{tpu_custom_call.1} parent=5 // pred_fallthru
        _
    $region6: #{tpu_custom_call.1} parent=1 // loop_footer
      %s35 = sadd.s32 1, %s31
    $region7: #{tpu_custom_call.1} parent=1 // loop_footer_branch
      %30 = sbr.rel target = $region3
    $region8: #{tpu_custom_call.1} parent=1 // loop_exit
      _
    %1830 = vsyncpa [#allocation4], 1
    %s1831 = scalar_lea.sflag [#allocation4], 1
    %1832 = vsyncpa %s1831, 1
    %1833 = vsyncpa [#allocation7], 1
    %1834 = vsyncpa [#allocation10], 1
    %1835 = vsyncpa [#allocation13], 1
    %1836 = vsyncpa [#allocation5], 1
    %s1837 = scalar_lea.sflag [#allocation5], 1
    %1838 = vsyncpa %s1837, 1

</llo_original>
